<compile_context>
chip_gen: v7x
topology: tpu7x:2x2x1
jax: 0.10.0
libtpu: 0.0.40
codegen_flags: <defaults>
</compile_context>

<pallas_src>
import functools

import jax
import jax.numpy as jnp
from jax.experimental import pallas as pl
from jax.experimental.pallas import tpu as pltpu

# Synthetic "encodec_24khz" hyperparameters (small stand-ins for the real model).
HOP = 16          # encoder downsample factor       (real: 320)
D = 32            # embedding / codebook dim        (real: 128)
BINS = 64         # codebook size per quantizer     (real: 1024)
NUM_Q = 4         # quantizers at max bandwidth     (real: 16)
BANDWIDTHS = [1.5, 3.0, 6.0, 12.0]
NQ_FOR_BW = [1, 2, 3, 4]       # quantizers used per bandwidth (synthetic mapping)


# ------------------- fused encoder + residual-VQ + feature-sum kernel -------------------
def _encodec_features_kernel(frames_ref, w_ref, b_ref, cb_ref, c2h_ref, out_ref,
                             *, n_q, bins, score_in_bf16):
    # frames_ref: (HOP, tile_t)   w_ref: (D, HOP)   b_ref: (D, 1)
    # cb_ref: (n_q, BINS, D)      c2h_ref: (n_q, BINS, 1)   out_ref: (D, tile_t)
    xt = frames_ref[...]                                             # (HOP, tile_t)
    emb = jnp.dot(w_ref[...], xt, preferred_element_type=jnp.float32) + b_ref[...]
    # ELU: clamp the exp argument so the discarded positive branch never overflows.
    emb = jnp.where(emb > 0.0, emb, jnp.exp(jnp.minimum(emb, 0.0)) - 1.0)  # (D, tile_t)

    residual = emb
    tile_t = emb.shape[1]
    # code index on the sublane (BINS) axis, shared across quantizers
    ids = jax.lax.broadcasted_iota(jnp.int32, (bins, tile_t), 0)

    # n_q <= 4 here: static unroll is fine (real NUM_Q=16 -> lax.fori_loop, see TODO).
    for q in range(n_q):
        cb = cb_ref[q]                                               # (BINS, D)
        # distance scoring: argmin ||r-c||^2 == argmin (0.5*||c||^2 - r.c)
        if score_in_bf16:
            dots = jnp.dot(cb.astype(jnp.bfloat16), residual.astype(jnp.bfloat16),
                           preferred_element_type=jnp.float32)       # (BINS, tile_t)
        else:
            dots = jnp.dot(cb, residual, preferred_element_type=jnp.float32)
        score = c2h_ref[q] - dots                                    # (BINS, tile_t)

        # Fused argmin: order-preserving int32 key (sign-flip trick) with the code
        # index packed into the low log2(bins) bits -> one cross-sublane min gives
        # both the min and a first-index tie-break (ties within ~2^-17 relative).
        sbits = pltpu.bitcast(score, jnp.int32)
        key = sbits ^ ((sbits >> 31) & jnp.int32(0x7FFFFFFF))        # monotone in score
        key = (key & jnp.int32(~(bins - 1))) | ids
        code = jnp.min(key, axis=0, keepdims=True) & jnp.int32(bins - 1)   # (1, tile_t)

        onehot = (ids == code).astype(jnp.float32)                   # (BINS, tile_t)
        # quantized rows reconstructed exactly in f32: cb^T @ onehot -> (D, tile_t)
        quant = jax.lax.dot_general(cb, onehot, (((0,), (0,)), ((), ())),
                                    preferred_element_type=jnp.float32)
        residual = residual - quant

    # features = sum_q quantized_q = emb - final residual; already lane-major (D, tile_t).
    out_ref[...] = emb - residual


# ----------------------------------- wrapper -------------------------------------------
def _pick_tile_t(B, T, max_tile=1024):
    """Largest tile_t (T itself, or a multiple of 128 dividing T) <= max_tile, keeping
    >= 2 total grid steps when B == 1 so the v7x megacore has parallel work."""
    if T <= max_tile:
        tile = T
    else:
        tile = T   # fallback: single tile along T if no aligned divisor found
        c = (max_tile // 128) * 128
        while c >= 128:
            if T % c == 0:
                tile = c
                break
            c -= 128
    if B == 1 and tile == T and T % 2 == 0 and (T // 2) % 128 == 0:
        tile = T // 2
    return tile


def encodec_features(audio, bandwidth_id, params, *, tile_t=None, score_in_bf16=False):
    """audio: (B, L) f32; bandwidth_id: static python int index into BANDWIDTHS
    (one compile per bandwidth). Returns (B, D, T), matching torch's
    `features.transpose(1, 2)`."""
    B, L = audio.shape
    T = L // HOP
    n_q = NQ_FOR_BW[int(bandwidth_id)]

    # Lane-major frame layout (B, HOP, T): one tiny wrapper-side transpose so every
    # in-kernel tensor keeps time on the lane axis (full VPU occupancy, lane-dense store).
    frames_t = jnp.swapaxes(audio[:, : T * HOP].reshape(B, T, HOP), 1, 2)

    if tile_t is None:
        tile_t = _pick_tile_t(B, T)
    assert T % tile_t == 0 and (tile_t == T or tile_t % 128 == 0), (T, tile_t)
    grid = (B, T // tile_t)

    w_t = params["enc_w"].T                     # (D, HOP)
    b_t = params["enc_b"].reshape(D, 1)         # (D, 1)
    codebooks = params["codebooks"][:n_q]       # (n_q, BINS, D)
    c2_half = params["c2_half"][:n_q]           # (n_q, BINS, 1)

    kernel = functools.partial(_encodec_features_kernel, n_q=n_q, bins=BINS,
                               score_in_bf16=score_in_bf16)
    feats = pl.pallas_call(
        kernel,
        out_shape=jax.ShapeDtypeStruct((B, D, T), jnp.float32),
        grid_spec=pltpu.PrefetchScalarGridSpec(
            num_scalar_prefetch=0,
            grid=grid,
            in_specs=[
                # streamed per-tile input, already lane-major
                pl.BlockSpec((None, HOP, tile_t), lambda b, t: (b, 0, t)),
                # small weights: constant index_map -> fetched once, VMEM-resident
                pl.BlockSpec((D, HOP), lambda b, t: (0, 0)),
                pl.BlockSpec((D, 1), lambda b, t: (0, 0)),
                pl.BlockSpec((n_q, BINS, D), lambda b, t: (0, 0, 0)),
                pl.BlockSpec((n_q, BINS, 1), lambda b, t: (0, 0, 0)),
            ],
            # lane-dense (D, tile_t) output block, no in-kernel transpose needed
            out_specs=pl.BlockSpec((None, D, tile_t), lambda b, t: (b, 0, t)),
        ),
        compiler_params=pltpu.CompilerParams(
            # every (batch, time-tile) is independent: both axes shard across TCs on v7x
            dimension_semantics=("parallel", "parallel"),
            vmem_limit_bytes=32 * 1024 * 1024,
        ),
    )(frames_t, w_t, b_t, codebooks, c2_half)
    return feats                                # (B, D, T)


# ------------------------------ pure-JAX reference -------------------------------------
def encodec_features_ref(audio, bandwidth_id, params):
    B, L = audio.shape
    T = L // HOP
    n_q = NQ_FOR_BW[int(bandwidth_id)]
    frames = audio[:, : T * HOP].reshape(B, T, HOP)
    emb = jnp.einsum("bth,hd->btd", frames, params["enc_w"],
                     precision=jax.lax.Precision.HIGHEST) + params["enc_b"]
    emb = jnp.where(emb > 0.0, emb, jnp.expm1(emb))
    residual = emb
    feats = jnp.zeros_like(emb)
    for q in range(n_q):
        cb = params["codebooks"][q]                       # (BINS, D)
        c2h = params["c2_half"][q, :, 0]                  # (BINS,)
        dots = jnp.einsum("btd,nd->btn", residual, cb,
                          precision=jax.lax.Precision.HIGHEST)
        code = jnp.argmin(c2h[None, None, :] - dots, axis=-1)   # (B, T)
        quant = cb[code]                                  # (B, T, D)
        feats = feats + quant
        residual = residual - quant
    return jnp.transpose(feats, (0, 2, 1))                # (B, D, T)


def init_params(key):
    k1, k2, k3 = jax.random.split(key, 3)
    enc_w = 0.1 * jax.random.normal(k1, (HOP, D), jnp.float32)
    enc_b = 0.01 * jax.random.normal(k2, (D,), jnp.float32)
    codebooks = jax.random.normal(k3, (NUM_Q, BINS, D), jnp.float32)
    # precompute 0.5*||c||^2 once, already shaped for the lane-major kernel
    c2_half = 0.5 * jnp.sum(codebooks * codebooks, axis=-1)[..., None]  # (NUM_Q,BINS,1)
    return {"enc_w": enc_w, "enc_b": enc_b,
            "codebooks": codebooks, "c2_half": c2_half}


if __name__ == "__main__":
    key = jax.random.PRNGKey(0)
    kp, ka = jax.random.split(key)
    params = init_params(kp)

    B, L = 2, 4096                     # -> T = 256 frames
    audio = jax.random.normal(ka, (B, L), jnp.float32)
    bandwidth_id = 2                   # uses NQ_FOR_BW[2] = 3 quantizers

    out = encodec_features(audio, bandwidth_id, params)   # tile_t = T = 256, grid (2, 1)
    out = jax.block_until_ready(out)

    T = L // HOP
    assert out.shape == (B, D, T), out.shape
    assert out.dtype == jnp.float32
    assert bool(jnp.all(jnp.isfinite(out)))

    ref = jax.block_until_ready(encodec_features_ref(audio, bandwidth_id, params))
    # per-frame comparison; tolerate a tiny fraction of frames where an fp-near-tie in
    # the argmin flips between the MXU kernel path and the XLA reference path
    frame_err = jnp.max(jnp.abs(out - ref), axis=1)                   # (B, T)
    mismatch_frac = float(jnp.mean((frame_err > 1e-3).astype(jnp.float32)))
    assert mismatch_frac <= 0.01, f"mismatched frame fraction: {mismatch_frac}"

    print("KERNEL_OK")
</pallas_src>

<mosaic_0001>
module attributes {stable_mosaic.version = 11 : i64} {
  func.func @_encodec_features_kernel(%arg0: i32, %arg1: i32, %arg2: memref<1x16x256xf32, #tpu.memory_space<vmem>>, %arg3: memref<32x16xf32, #tpu.memory_space<vmem>>, %arg4: memref<32x1xf32, #tpu.memory_space<vmem>>, %arg5: memref<3x64x32xf32, #tpu.memory_space<vmem>>, %arg6: memref<3x64x1xf32, #tpu.memory_space<vmem>>, %arg7: memref<1x32x256xf32, #tpu.memory_space<vmem>>) attributes {dimension_semantics = [#tpu.dimension_semantics<parallel>, #tpu.dimension_semantics<parallel>], iteration_bounds = array<i64: 2, 1>, scalar_prefetch = 0 : i64, scratch_operands = 0 : i64, tpu.core_type = #tpu.core_type<tc>, window_params = [{transform_indices = @transform_0, window_bounds = array<i64: 1, 16, 256>}, {pipeline_mode = #tpu.pipeline_mode<synchronous>, transform_indices = @transform_1, window_bounds = array<i64: 32, 16>}, {pipeline_mode = #tpu.pipeline_mode<synchronous>, transform_indices = @transform_2, window_bounds = array<i64: 32, 1>}, {pipeline_mode = #tpu.pipeline_mode<synchronous>, transform_indices = @transform_3, window_bounds = array<i64: 3, 64, 32>}, {pipeline_mode = #tpu.pipeline_mode<synchronous>, transform_indices = @transform_4, window_bounds = array<i64: 3, 64, 1>}, {transform_indices = @transform_5, window_bounds = array<i64: 1, 32, 256>}]} {
    %c0 = arith.constant 0 : index
    %c0_0 = arith.constant 0 : index
    %c0_1 = arith.constant 0 : index
    %0 = vector.load %arg2[%c0, %c0_0, %c0_1] : memref<1x16x256xf32, #tpu.memory_space<vmem>>, vector<1x16x256xf32>
    %1 = vector.shape_cast %0 : vector<1x16x256xf32> to vector<16x256xf32>
    %c0_2 = arith.constant 0 : index
    %c0_3 = arith.constant 0 : index
    %2 = vector.load %arg3[%c0_2, %c0_3] : memref<32x16xf32, #tpu.memory_space<vmem>>, vector<32x16xf32>
    %cst = arith.constant dense<0.000000e+00> : vector<32x256xf32>
    %3 = tpu.matmul %2, %1, %cst {dimension_numbers = #tpu.dot_dimension_numbers<[1], [0], [0], [1], [0, 0, 1, 1], [], []>} : vector<32x16xf32>, vector<16x256xf32>, vector<32x256xf32> -> vector<32x256xf32>
    %c0_4 = arith.constant 0 : index
    %c0_5 = arith.constant 0 : index
    %4 = vector.load %arg4[%c0_4, %c0_5] : memref<32x1xf32, #tpu.memory_space<vmem>>, vector<32x1xf32>
    %5 = vector.broadcast %4 : vector<32x1xf32> to vector<32x256xf32>
    %6 = arith.addf %3, %5 : vector<32x256xf32>
    %cst_6 = arith.constant 0.000000e+00 : f32
    %7 = vector.broadcast %cst_6 : f32 to vector<32x256xf32>
    %8 = arith.cmpf ogt, %6, %7 : vector<32x256xf32>
    %cst_7 = arith.constant 0.000000e+00 : f32
    %9 = vector.broadcast %cst_7 : f32 to vector<32x256xf32>
    %10 = arith.minimumf %6, %9 : vector<32x256xf32>
    %11 = math.exp %10 : vector<32x256xf32>
    %cst_8 = arith.constant 1.000000e+00 : f32
    %12 = vector.broadcast %cst_8 : f32 to vector<32x256xf32>
    %13 = arith.subf %11, %12 : vector<32x256xf32>
    %14 = arith.select %8, %6, %13 : vector<32x256xi1>, vector<32x256xf32>
    %15 = tpu.iota {dimensions = array<i32: 0>} : vector<64x256xi32>
    %c0_9 = arith.constant 0 : index
    %c0_10 = arith.constant 0 : index
    %c0_11 = arith.constant 0 : index
    %16 = vector.load %arg5[%c0_9, %c0_10, %c0_11] : memref<3x64x32xf32, #tpu.memory_space<vmem>>, vector<1x64x32xf32>
    %17 = vector.shape_cast %16 : vector<1x64x32xf32> to vector<64x32xf32>
    %cst_12 = arith.constant dense<0.000000e+00> : vector<64x256xf32>
    %18 = tpu.matmul %17, %14, %cst_12 {dimension_numbers = #tpu.dot_dimension_numbers<[1], [0], [0], [1], [0, 0, 1, 1], [], []>} : vector<64x32xf32>, vector<32x256xf32>, vector<64x256xf32> -> vector<64x256xf32>
    %c0_13 = arith.constant 0 : index
    %c0_14 = arith.constant 0 : index
    %c0_15 = arith.constant 0 : index
    %19 = vector.load %arg6[%c0_13, %c0_14, %c0_15] : memref<3x64x1xf32, #tpu.memory_space<vmem>>, vector<1x64x1xf32>
    %20 = vector.shape_cast %19 : vector<1x64x1xf32> to vector<64x1xf32>
    %21 = vector.broadcast %20 : vector<64x1xf32> to vector<64x256xf32>
    %22 = arith.subf %21, %18 : vector<64x256xf32>
    %23 = tpu.bitcast %22 : vector<64x256xf32> -> vector<64x256xi32>
    %c31_i32 = arith.constant 31 : i32
    %24 = vector.broadcast %c31_i32 : i32 to vector<64x256xi32>
    %25 = arith.shrsi %23, %24 : vector<64x256xi32>
    %c2147483647_i32 = arith.constant 2147483647 : i32
    %26 = vector.broadcast %c2147483647_i32 : i32 to vector<64x256xi32>
    %27 = arith.andi %25, %26 : vector<64x256xi32>
    %28 = arith.xori %23, %27 : vector<64x256xi32>
    %c-64_i32 = arith.constant -64 : i32
    %29 = vector.broadcast %c-64_i32 : i32 to vector<64x256xi32>
    %30 = arith.andi %28, %29 : vector<64x256xi32>
    %31 = arith.ori %30, %15 : vector<64x256xi32>
    %cst_16 = arith.constant dense<2147483647> : vector<256xi32>
    %32 = vector.multi_reduction <minsi>, %31, %cst_16 [0] : vector<64x256xi32> to vector<256xi32>
    %33 = vector.shape_cast %32 : vector<256xi32> to vector<1x256xi32>
    %c63_i32 = arith.constant 63 : i32
    %34 = vector.broadcast %c63_i32 : i32 to vector<1x256xi32>
    %35 = arith.andi %33, %34 : vector<1x256xi32>
    %36 = vector.broadcast %35 : vector<1x256xi32> to vector<64x256xi32>
    %37 = arith.cmpi eq, %15, %36 : vector<64x256xi32>
    %38 = arith.extui %37 : vector<64x256xi1> to vector<64x256xi32>
    %39 = arith.sitofp %38 : vector<64x256xi32> to vector<64x256xf32>
    %cst_17 = arith.constant dense<0.000000e+00> : vector<32x256xf32>
    %40 = tpu.matmul %17, %39, %cst_17 {dimension_numbers = #tpu.dot_dimension_numbers<[0], [0], [1], [1], [0, 1, 1, 1], [], []>} : vector<64x32xf32>, vector<64x256xf32>, vector<32x256xf32> -> vector<32x256xf32>
    %41 = arith.subf %14, %40 : vector<32x256xf32>
    %c1 = arith.constant 1 : index
    %c0_18 = arith.constant 0 : index
    %c0_19 = arith.constant 0 : index
    %42 = vector.load %arg5[%c1, %c0_18, %c0_19] : memref<3x64x32xf32, #tpu.memory_space<vmem>>, vector<1x64x32xf32>
    %43 = vector.shape_cast %42 : vector<1x64x32xf32> to vector<64x32xf32>
    %cst_20 = arith.constant dense<0.000000e+00> : vector<64x256xf32>
    %44 = tpu.matmul %43, %41, %cst_20 {dimension_numbers = #tpu.dot_dimension_numbers<[1], [0], [0], [1], [0, 0, 1, 1], [], []>} : vector<64x32xf32>, vector<32x256xf32>, vector<64x256xf32> -> vector<64x256xf32>
    %c1_21 = arith.constant 1 : index
    %c0_22 = arith.constant 0 : index
    %c0_23 = arith.constant 0 : index
    %45 = vector.load %arg6[%c1_21, %c0_22, %c0_23] : memref<3x64x1xf32, #tpu.memory_space<vmem>>, vector<1x64x1xf32>
    %46 = vector.shape_cast %45 : vector<1x64x1xf32> to vector<64x1xf32>
    %47 = vector.broadcast %46 : vector<64x1xf32> to vector<64x256xf32>
    %48 = arith.subf %47, %44 : vector<64x256xf32>
    %49 = tpu.bitcast %48 : vector<64x256xf32> -> vector<64x256xi32>
    %c31_i32_24 = arith.constant 31 : i32
    %50 = vector.broadcast %c31_i32_24 : i32 to vector<64x256xi32>
    %51 = arith.shrsi %49, %50 : vector<64x256xi32>
    %c2147483647_i32_25 = arith.constant 2147483647 : i32
    %52 = vector.broadcast %c2147483647_i32_25 : i32 to vector<64x256xi32>
    %53 = arith.andi %51, %52 : vector<64x256xi32>
    %54 = arith.xori %49, %53 : vector<64x256xi32>
    %c-64_i32_26 = arith.constant -64 : i32
    %55 = vector.broadcast %c-64_i32_26 : i32 to vector<64x256xi32>
    %56 = arith.andi %54, %55 : vector<64x256xi32>
    %57 = arith.ori %56, %15 : vector<64x256xi32>
    %cst_27 = arith.constant dense<2147483647> : vector<256xi32>
    %58 = vector.multi_reduction <minsi>, %57, %cst_27 [0] : vector<64x256xi32> to vector<256xi32>
    %59 = vector.shape_cast %58 : vector<256xi32> to vector<1x256xi32>
    %c63_i32_28 = arith.constant 63 : i32
    %60 = vector.broadcast %c63_i32_28 : i32 to vector<1x256xi32>
    %61 = arith.andi %59, %60 : vector<1x256xi32>
    %62 = vector.broadcast %61 : vector<1x256xi32> to vector<64x256xi32>
    %63 = arith.cmpi eq, %15, %62 : vector<64x256xi32>
    %64 = arith.extui %63 : vector<64x256xi1> to vector<64x256xi32>
    %65 = arith.sitofp %64 : vector<64x256xi32> to vector<64x256xf32>
    %cst_29 = arith.constant dense<0.000000e+00> : vector<32x256xf32>
    %66 = tpu.matmul %43, %65, %cst_29 {dimension_numbers = #tpu.dot_dimension_numbers<[0], [0], [1], [1], [0, 1, 1, 1], [], []>} : vector<64x32xf32>, vector<64x256xf32>, vector<32x256xf32> -> vector<32x256xf32>
    %67 = arith.subf %41, %66 : vector<32x256xf32>
    %c2 = arith.constant 2 : index
    %c0_30 = arith.constant 0 : index
    %c0_31 = arith.constant 0 : index
    %68 = vector.load %arg5[%c2, %c0_30, %c0_31] : memref<3x64x32xf32, #tpu.memory_space<vmem>>, vector<1x64x32xf32>
    %69 = vector.shape_cast %68 : vector<1x64x32xf32> to vector<64x32xf32>
    %cst_32 = arith.constant dense<0.000000e+00> : vector<64x256xf32>
    %70 = tpu.matmul %69, %67, %cst_32 {dimension_numbers = #tpu.dot_dimension_numbers<[1], [0], [0], [1], [0, 0, 1, 1], [], []>} : vector<64x32xf32>, vector<32x256xf32>, vector<64x256xf32> -> vector<64x256xf32>
    %c2_33 = arith.constant 2 : index
    %c0_34 = arith.constant 0 : index
    %c0_35 = arith.constant 0 : index
    %71 = vector.load %arg6[%c2_33, %c0_34, %c0_35] : memref<3x64x1xf32, #tpu.memory_space<vmem>>, vector<1x64x1xf32>
    %72 = vector.shape_cast %71 : vector<1x64x1xf32> to vector<64x1xf32>
    %73 = vector.broadcast %72 : vector<64x1xf32> to vector<64x256xf32>
    %74 = arith.subf %73, %70 : vector<64x256xf32>
    %75 = tpu.bitcast %74 : vector<64x256xf32> -> vector<64x256xi32>
    %c31_i32_36 = arith.constant 31 : i32
    %76 = vector.broadcast %c31_i32_36 : i32 to vector<64x256xi32>
    %77 = arith.shrsi %75, %76 : vector<64x256xi32>
    %c2147483647_i32_37 = arith.constant 2147483647 : i32
    %78 = vector.broadcast %c2147483647_i32_37 : i32 to vector<64x256xi32>
    %79 = arith.andi %77, %78 : vector<64x256xi32>
    %80 = arith.xori %75, %79 : vector<64x256xi32>
    %c-64_i32_38 = arith.constant -64 : i32
    %81 = vector.broadcast %c-64_i32_38 : i32 to vector<64x256xi32>
    %82 = arith.andi %80, %81 : vector<64x256xi32>
    %83 = arith.ori %82, %15 : vector<64x256xi32>
    %cst_39 = arith.constant dense<2147483647> : vector<256xi32>
    %84 = vector.multi_reduction <minsi>, %83, %cst_39 [0] : vector<64x256xi32> to vector<256xi32>
    %85 = vector.shape_cast %84 : vector<256xi32> to vector<1x256xi32>
    %c63_i32_40 = arith.constant 63 : i32
    %86 = vector.broadcast %c63_i32_40 : i32 to vector<1x256xi32>
    %87 = arith.andi %85, %86 : vector<1x256xi32>
    %88 = vector.broadcast %87 : vector<1x256xi32> to vector<64x256xi32>
    %89 = arith.cmpi eq, %15, %88 : vector<64x256xi32>
    %90 = arith.extui %89 : vector<64x256xi1> to vector<64x256xi32>
    %91 = arith.sitofp %90 : vector<64x256xi32> to vector<64x256xf32>
    %cst_41 = arith.constant dense<0.000000e+00> : vector<32x256xf32>
    %92 = tpu.matmul %69, %91, %cst_41 {dimension_numbers = #tpu.dot_dimension_numbers<[0], [0], [1], [1], [0, 1, 1, 1], [], []>} : vector<64x32xf32>, vector<64x256xf32>, vector<32x256xf32> -> vector<32x256xf32>
    %93 = arith.subf %67, %92 : vector<32x256xf32>
    %94 = arith.subf %14, %93 : vector<32x256xf32>
    %c0_42 = arith.constant 0 : index
    %c0_43 = arith.constant 0 : index
    %c0_44 = arith.constant 0 : index
    %95 = vector.load %arg7[%c0_42, %c0_43, %c0_44] : memref<1x32x256xf32, #tpu.memory_space<vmem>>, vector<1x32x256xf32>
    %96 = vector.shape_cast %95 : vector<1x32x256xf32> to vector<32x256xf32>
    %97 = vector.shape_cast %94 : vector<32x256xf32> to vector<1x32x256xf32>
    tpu.vector_store %arg7[%c0_42, %c0_43, %c0_44], %97 {strides = array<i32>} : memref<1x32x256xf32, #tpu.memory_space<vmem>>, vector<1x32x256xf32>,
    return
  }
  func.func @transform_0(%arg0: i32, %arg1: i32) -> (i32, i32, i32) {
    %c0_i32 = arith.constant 0 : i32
    %c0_i32_0 = arith.constant 0 : i32
    return %arg0, %c0_i32, %arg1 : i32, i32, i32
  }
  func.func @transform_1(%arg0: i32, %arg1: i32) -> (i32, i32) {
    %c0_i32 = arith.constant 0 : i32
    %c0_i32_0 = arith.constant 0 : i32
    %c0_i32_1 = arith.constant 0 : i32
    return %c0_i32, %c0_i32_0 : i32, i32
  }
  func.func @transform_2(%arg0: i32, %arg1: i32) -> (i32, i32) {
    %c0_i32 = arith.constant 0 : i32
    %c0_i32_0 = arith.constant 0 : i32
    %c0_i32_1 = arith.constant 0 : i32
    return %c0_i32, %c0_i32_0 : i32, i32
  }
  func.func @transform_3(%arg0: i32, %arg1: i32) -> (i32, i32, i32) {
    %c0_i32 = arith.constant 0 : i32
    %c0_i32_0 = arith.constant 0 : i32
    %c0_i32_1 = arith.constant 0 : i32
    %c0_i32_2 = arith.constant 0 : i32
    return %c0_i32, %c0_i32_0, %c0_i32_1 : i32, i32, i32
  }
  func.func @transform_4(%arg0: i32, %arg1: i32) -> (i32, i32, i32) {
    %c0_i32 = arith.constant 0 : i32
    %c0_i32_0 = arith.constant 0 : i32
    %c0_i32_1 = arith.constant 0 : i32
    %c0_i32_2 = arith.constant 0 : i32
    return %c0_i32, %c0_i32_0, %c0_i32_1 : i32, i32, i32
  }
  func.func @transform_5(%arg0: i32, %arg1: i32) -> (i32, i32, i32) {
    %c0_i32 = arith.constant 0 : i32
    %c0_i32_0 = arith.constant 0 : i32
    return %arg0, %c0_i32, %arg1 : i32, i32, i32
  }
}

</mosaic_0001>

<llo_original>
// kernel: tpu_custom_call.1
$region0: #{tpu_custom_call.1}
  #allocation0 [shape = 'u32[]', space=smem, size = 0x4, offset = 0x4, fixed_abs, tag = 'smem constant byte address 0x4 - core index']
  #allocation1 [shape = 'u32[144,128]{1,0:T(1,128)}', space=vmem, size = 0x12000, scoped, tag = 'internal scratch']
  %s0 = inlined_call_operand.vmem [shape: f32[2,16,256], index: 0, kind: input, shape index: {}]
  %s1 = inlined_call_operand.vmem [shape: f32[32,16], index: 1, kind: input, shape index: {}]
  %s2 = inlined_call_operand.vmem [shape: f32[32,1], index: 2, kind: input, shape index: {}]
  %s3 = inlined_call_operand.vmem [shape: f32[3,64,32], index: 3, kind: input, shape index: {}]
  %s4 = inlined_call_operand.vmem [shape: f32[3,64,1], index: 4, kind: input, shape index: {}]
  %s5 = inlined_call_operand.hbm [shape: f32[2,32,256], index: 5, kind: output, shape index: {}]
  %s6 = sld [smem:[#allocation0]]
  $region53: #{tpu_custom_call.1} parent=0
    _
  %s8 = ssub.s32 1, %s6
  %s9 = scalar_select 0, %s8, %s6
  $region1: #{tpu_custom_call.1} parent=0
    #allocation2 [shape = 'u8[65536]{0}', space=vmem, size = 0x10000, scoped, tag = 'output window, operand 0']
    #allocation3 [shape = 's32[2]{0}', space=sflag, size = 0x8, scoped, tag = 'scoped memory for tpu_custom_call.1']
    %10 = vsyncpa [#allocation3], 0
    %s11 = scalar_lea.sflag [#allocation3], 1
    %12 = vsyncpa %s11, 0
    loop: start=0, step=1, limit=4
    $region2: #{tpu_custom_call.1} parent=1 // loop_pre_header
      _
    $region3: #{tpu_custom_call.1} parent=1 // loop_header
      %s14 = sphi 0, %s18
      %p15 = scmp.ge.s32.totalorder %s14, 4
      %s21 = sphi 0, %s33
      %s22 = sphi 0, %s29
      %s23 = sphi 0, %s21
      %s24 = sphi 0, %s22
      %s25 = sphi 0, %s23
      %s26 = sphi 0, %s24
      %s38 = sphi 0, %s40
      %s41 = sphi 0, %s38
      %s42 = sphi 0, %s41
      %s58 = sphi 0, %s42
      %s62 = sphi 0, %s62
      %s64 = sphi 0, %s62
      %s65 = sphi 0, %s64
      %s79 = sphi 0, %s65
      %s83 = sphi 0, %s83
      %s85 = sphi 0, %s83
      %s86 = sphi 0, %s85
      %s100 = sphi 0, %s86
      %s104 = sphi 0, %s104
      %s106 = sphi 0, %s104
      %s107 = sphi 0, %s106
      %s121 = sphi 0, %s107
      %s125 = sphi 0, %s125
      %s127 = sphi 0, %s125
      %s128 = sphi 0, %s127
      %s142 = sphi 0, %s128
      %s150 = sphi 0, %s152
      %s153 = sphi 0, %s150
      %s154 = sphi 0, %s153
      %s170 = sphi 0, %s154
    $region4: #{tpu_custom_call.1} parent=1 // loop_header_branch
      %17 = sbr.rel (%p15) target = $region8
    $region5: #{tpu_custom_call.1} parent=1 // loop_body
      %s19 = ssub.s32 %s14, 1
      %s20 = ssub.s32 %s14, 2
      %s27 = sadd.s32 1, %s22
      %p28 = scmp.ge.s32.totalorder %s27, 1
      %s29 = scalar_select %p28, 0, %s27
      %s30 = sadd.s32 1, %s21
      %s31 = scalar_select %p28, %s30, %s21
      %p32 = scmp.ge.s32.totalorder %s31, 2
      %s33 = scalar_select %p32, 0, %s31
      %s34 = ssub.s32 %s21, %s33
      %s35 = ssub.s32 %s22, %s29
      %s36 = sor.u32 %s34, %s35
      %p37 = scmp.eq.s32.totalorder %s36, 0
      %s39 = sadd.s32 %s38, 1
      %s40 = scalar_select %p37, %s38, %s39
      %p43 = pneg %p37
      %p44 = scmp.eq.s32.totalorder %s14, 1
      %p45 = por %p43, %p44
      %p46 = scmp.ne.s32.totalorder %s38, %s41
      %p47 = scmp.eq.s32.totalorder %s14, 0
      %p48 = por %p46, %p47
      %p49 = scmp.ne.s32.totalorder %s38, %s41
      %p50 = scmp.eq.s32.totalorder %s19, 1
      %p51 = por %p49, %p50
      %p52 = scmp.ne.s32.totalorder %s41, %s42
      %p53 = scmp.eq.s32.totalorder %s19, 0
      %p54 = por %p52, %p53
      %p55 = scmp.ne.s32.totalorder %s41, %s42
      %p56 = scmp.eq.s32.totalorder %s20, 1
      %p57 = por %p55, %p56
      %p59 = scmp.ne.s32.totalorder %s42, %s58
      %p60 = scmp.eq.s32.totalorder %s20, 0
      %p61 = por %p59, %p60
      %s63 = sadd.s32 %s62, 1
      %p66 = scmp.eq.s32.totalorder %s14, 1
      %p67 = scmp.ne.s32.totalorder %s62, %s64
      %p68 = scmp.eq.s32.totalorder %s14, 0
      %p69 = por %p67, %p68
      %p70 = scmp.ne.s32.totalorder %s62, %s64
      %p71 = scmp.eq.s32.totalorder %s19, 1
      %p72 = por %p70, %p71
      %p73 = scmp.ne.s32.totalorder %s64, %s65
      %p74 = scmp.eq.s32.totalorder %s19, 0
      %p75 = por %p73, %p74
      %p76 = scmp.ne.s32.totalorder %s64, %s65
      %p77 = scmp.eq.s32.totalorder %s20, 1
      %p78 = por %p76, %p77
      %p80 = scmp.ne.s32.totalorder %s65, %s79
      %p81 = scmp.eq.s32.totalorder %s20, 0
      %p82 = por %p80, %p81
      %s84 = sadd.s32 %s83, 1
      %p87 = scmp.eq.s32.totalorder %s14, 1
      %p88 = scmp.ne.s32.totalorder %s83, %s85
      %p89 = scmp.eq.s32.totalorder %s14, 0
      %p90 = por %p88, %p89
      %p91 = scmp.ne.s32.totalorder %s83, %s85
      %p92 = scmp.eq.s32.totalorder %s19, 1
      %p93 = por %p91, %p92
      %p94 = scmp.ne.s32.totalorder %s85, %s86
      %p95 = scmp.eq.s32.totalorder %s19, 0
      %p96 = por %p94, %p95
      %p97 = scmp.ne.s32.totalorder %s85, %s86
      %p98 = scmp.eq.s32.totalorder %s20, 1
      %p99 = por %p97, %p98
      %p101 = scmp.ne.s32.totalorder %s86, %s100
      %p102 = scmp.eq.s32.totalorder %s20, 0
      %p103 = por %p101, %p102
      %s105 = sadd.s32 %s104, 1
      %p108 = scmp.eq.s32.totalorder %s14, 1
      %p109 = scmp.ne.s32.totalorder %s104, %s106
      %p110 = scmp.eq.s32.totalorder %s14, 0
      %p111 = por %p109, %p110
      %p112 = scmp.ne.s32.totalorder %s104, %s106
      %p113 = scmp.eq.s32.totalorder %s19, 1
      %p114 = por %p112, %p113
      %p115 = scmp.ne.s32.totalorder %s106, %s107
      %p116 = scmp.eq.s32.totalorder %s19, 0
      %p117 = por %p115, %p116
      %p118 = scmp.ne.s32.totalorder %s106, %s107
      %p119 = scmp.eq.s32.totalorder %s20, 1
      %p120 = por %p118, %p119
      %p122 = scmp.ne.s32.totalorder %s107, %s121
      %p123 = scmp.eq.s32.totalorder %s20, 0
      %p124 = por %p122, %p123
      %s126 = sadd.s32 %s125, 1
      %p129 = scmp.eq.s32.totalorder %s14, 1
      %p130 = scmp.ne.s32.totalorder %s125, %s127
      %p131 = scmp.eq.s32.totalorder %s14, 0
      %p132 = por %p130, %p131
      %p133 = scmp.ne.s32.totalorder %s125, %s127
      %p134 = scmp.eq.s32.totalorder %s19, 1
      %p135 = por %p133, %p134
      %p136 = scmp.ne.s32.totalorder %s127, %s128
      %p137 = scmp.eq.s32.totalorder %s19, 0
      %p138 = por %p136, %p137
      %p139 = scmp.ne.s32.totalorder %s127, %s128
      %p140 = scmp.eq.s32.totalorder %s20, 1
      %p141 = por %p139, %p140
      %p143 = scmp.ne.s32.totalorder %s128, %s142
      %p144 = scmp.eq.s32.totalorder %s20, 0
      %p145 = por %p143, %p144
      %s146 = ssub.s32 %s21, %s33
      %s147 = ssub.s32 %s22, %s29
      %s148 = sor.u32 %s146, %s147
      %p149 = scmp.eq.s32.totalorder %s148, 0
      %s151 = sadd.s32 %s150, 1
      %s152 = scalar_select %p149, %s150, %s151
      %p155 = pneg %p149
      %p156 = scmp.eq.s32.totalorder %s14, 1
      %p157 = por %p155, %p156
      %p158 = scmp.ne.s32.totalorder %s150, %s153
      %p159 = scmp.eq.s32.totalorder %s14, 0
      %p160 = por %p158, %p159
      %p161 = scmp.ne.s32.totalorder %s150, %s153
      %p162 = scmp.eq.s32.totalorder %s19, 1
      %p163 = por %p161, %p162
      %p164 = scmp.ne.s32.totalorder %s153, %s154
      %p165 = scmp.eq.s32.totalorder %s19, 0
      %p166 = por %p164, %p165
      %p167 = scmp.ne.s32.totalorder %s153, %s154
      %p168 = scmp.eq.s32.totalorder %s20, 1
      %p169 = por %p167, %p168
      %p171 = scmp.ne.s32.totalorder %s154, %s170
      %p172 = scmp.eq.s32.totalorder %s20, 0
      %p173 = por %p171, %p172
      %p174 = scmp.le.s32.totalorder 1, %s14
      %p175 = scmp.lt.s32.totalorder %s14, 3
      %p176 = pnand %p174, %p175
      %p177 = pneg %p176
      // Predicated region
      $region9: #{tpu_custom_call.1} parent=5 // pred_check
        _
      $region10: #{tpu_custom_call.1} parent=5 // pred_check_branch
        %179 = sbr.rel (%p176) target = $region12
      $region11: #{tpu_custom_call.1} parent=5 // pred_region
        %s180 = ssub.s32 %s14, 1
        // Predicated region
        $region13: #{tpu_custom_call.1} parent=11 // pred_check
          %p181 = pneg %p75
        $region14: #{tpu_custom_call.1} parent=11 // pred_check_branch
          %183 = sbr.rel (%p181) target = $region16
        $region15: #{tpu_custom_call.1} parent=11 // pred_region
          _
        $region16: #{tpu_custom_call.1} parent=11 // pred_fallthru
          _
        // Predicated region
        $region17: #{tpu_custom_call.1} parent=11 // pred_check
          %p184 = pneg %p96
        $region18: #{tpu_custom_call.1} parent=11 // pred_check_branch
          %186 = sbr.rel (%p184) target = $region20
        $region19: #{tpu_custom_call.1} parent=11 // pred_region
          _
        $region20: #{tpu_custom_call.1} parent=11 // pred_fallthru
          _
        // Predicated region
        $region21: #{tpu_custom_call.1} parent=11 // pred_check
          %p187 = pneg %p117
        $region22: #{tpu_custom_call.1} parent=11 // pred_check_branch
          %189 = sbr.rel (%p187) target = $region24
        $region23: #{tpu_custom_call.1} parent=11 // pred_region
          _
        $region24: #{tpu_custom_call.1} parent=11 // pred_fallthru
          _
        // Predicated region
        $region25: #{tpu_custom_call.1} parent=11 // pred_check
          %p190 = pneg %p138
        $region26: #{tpu_custom_call.1} parent=11 // pred_check_branch
          %192 = sbr.rel (%p190) target = $region28
        $region27: #{tpu_custom_call.1} parent=11 // pred_region
          _
        $region28: #{tpu_custom_call.1} parent=11 // pred_fallthru
          _
      $region12: #{tpu_custom_call.1} parent=5 // pred_fallthru
        _
      %p193 = scmp.lt.s32.totalorder %s14, 2
      // Predicated region
      $region29: #{tpu_custom_call.1} parent=5 // pred_check
        %p194 = pneg %p193
      $region30: #{tpu_custom_call.1} parent=5 // pred_check_branch
        %196 = sbr.rel (%p194) target = $region32
      $region31: #{tpu_custom_call.1} parent=5 // pred_region
        // Predicated region
        $region33: #{tpu_custom_call.1} parent=31 // pred_check
          %p197 = pneg %p48
        $region34: #{tpu_custom_call.1} parent=31 // pred_check_branch
          %199 = sbr.rel (%p197) target = $region36
        $region35: #{tpu_custom_call.1} parent=31 // pred_region
          %s200 = smul.u32 2, %s22
          %p201 = scmp.lt.s32.totalorder %s21, 1
          %s202 = scalar_select %p201, %s21, 1
          %p203 = scmp.lt.s32.totalorder %s200, 1
          %s204 = scalar_select %p203, %s200, 1
          %s205 = smul.addr %s202, 4
          %s206 = sadd.s32 %s204, %s205
          %s207 = smul.addr %s206, 8
          %s208 = scalar_lea.vmem %s0, %s207
          %s209 = smul.u32 2, %s22
        $region36: #{tpu_custom_call.1} parent=31 // pred_fallthru
          _
      $region32: #{tpu_custom_call.1} parent=5 // pred_fallthru
        _
      %p210 = scmp.le.s32.totalorder 1, %s14
      %p211 = scmp.lt.s32.totalorder %s14, 3
      %p212 = pnand %p210, %p211
      %p213 = pneg %p212
      // Predicated region
      $region37: #{tpu_custom_call.1} parent=5 // pred_check
        _
      $region38: #{tpu_custom_call.1} parent=5 // pred_check_branch
        %215 = sbr.rel (%p212) target = $region40
      $region39: #{tpu_custom_call.1} parent=5 // pred_region
        %s216 = ssub.s32 %s14, 1
        %s217 = smul.u32 2, %s24
        %p218 = scmp.lt.s32.totalorder %s23, 1
        %s219 = scalar_select %p218, %s23, 1
        %p220 = scmp.lt.s32.totalorder %s217, 1
        %s221 = scalar_select %p220, %s217, 1
        %s222 = smul.addr %s219, 4
        %s223 = sadd.s32 %s221, %s222
        %s224 = smul.addr %s223, 8
        %s225 = scalar_lea.vmem %s0, %s224
        %p226 = pneg %p54
        %p227 = pneg %p51
        %p228 = pneg %p75
        %p229 = pneg %p72
        %p230 = pneg %p96
        %p231 = pneg %p93
        %p232 = pneg %p117
        %p233 = pneg %p114
        %p234 = pneg %p138
        %p235 = pneg %p135
        %p236 = pneg %p166
        %p237 = pneg %p163
        %s238 = sand.u32 %s153, 1
        %s239 = scalar_lea.sflag [#allocation3], %s238
        %s240 = sand.u32 %s153, 1
        %s241 = smul.addr %s240, 64
        %s242 = scalar_lea.vmem [#allocation2], %s241
        %s243 = smul.u32 2, %s24
        %p244 = scmp.lt.s32.totalorder %s23, 1
        %s245 = scalar_select %p244, %s23, 1
        %p246 = scmp.lt.s32.totalorder %s243, 1
        %s247 = scalar_select %p246, %s243, 1
        %s248 = smul.addr %s245, 4
        %s249 = sadd.s32 %s247, %s248
        %s250 = smul.addr %s249, 8
        %s251 = scalar_lea.vmem %s0, %s250
        %s252 = smul.u32 2, %s24
        %s253 = smul.u32 2, %s24
        %v254 = vld [vmem:[%s251] sm:$0xff]
        %v255 = vld [vmem:[%s251 + $0x8] sm:$0xff]
        %v256 = vld [vmem:[%s251 + $0x10] sm:$0xff]
        %v257 = vld [vmem:[%s251 + $0x18] sm:$0xff]
        %v258 = vld [vmem:[%s1] sm:$0xff]
        %v259 = vld [vmem:[%s1 + $0x8] sm:$0xff]
        %v260 = vld [vmem:[%s1 + $0x10] sm:$0xff]
        %v261 = vld [vmem:[%s1 + $0x18] sm:$0xff]
        %v262 = vld [vmem:[%s2] sm:$0xff]
        %v263 = vld [vmem:[%s2 + $0x8] sm:$0xff]
        %v264 = vld [vmem:[%s2 + $0x10] sm:$0xff]
        %v265 = vld [vmem:[%s2 + $0x18] sm:$0xff]
        %267 = vset.pattern.permute.xlu0 0
        %268 = vperm.xlu0 %267, %v262
        %v269 = vpop.permute.xlu0 %268
        %272 = vset.pattern.permute.xlu0 0
        %273 = vperm.xlu0 %272, %v263
        %v274 = vpop.permute.xlu0 %273
        %277 = vset.pattern.permute.xlu0 0
        %278 = vperm.xlu0 %277, %v264
        %v279 = vpop.permute.xlu0 %278
        %282 = vset.pattern.permute.xlu0 0
        %283 = vperm.xlu0 %282, %v265
        %v284 = vpop.permute.xlu0 %283
        %vm286 = vcmask 130048
        %v288 = vsel %vm286, %v258, 0
        %v291 = vsel %vm286, %v259, 0
        %v294 = vsel %vm286, %v260, 0
        %v297 = vsel %vm286, %v261, 0
        %299 = vmatprep.subr.mxu0 %v255
        %300 = vmatpush1.msra.mxu0 %v254
        %301 = vmatprep.subr.mxu0 %v257
        %302 = vmatpush1.msra.mxu0 %v256
        %303 = vmatprep.subr.mxu0 0.0
        %304 = vmatpush1.msra.mxu0 0.0
        %305 = vmatprep.subr.mxu0 0.0
        %306 = vmatpush1.msra.mxu0 0.0
        %307 = vmatprep.subr.mxu0 0.0
        %308 = vmatpush1.msra.mxu0 0.0
        %309 = vmatprep.subr.mxu0 0.0
        %310 = vmatpush1.msra.mxu0 0.0
        %311 = vmatprep.subr.mxu0 0.0
        %312 = vmatpush1.msra.mxu0 0.0
        %313 = vmatprep.subr.mxu0 0.0
        %314 = vmatpush1.msra.mxu0 0.0
        %315 = vmatprep.subr.mxu0 0.0
        %316 = vmatpush1.msra.mxu0 0.0
        %317 = vmatprep.subr.mxu0 0.0
        %318 = vmatpush1.msra.mxu0 0.0
        %319 = vmatprep.subr.mxu0 0.0
        %320 = vmatpush1.msra.mxu0 0.0
        %321 = vmatprep.subr.mxu0 0.0
        %322 = vmatpush1.msra.mxu0 0.0
        %323 = vmatprep.subr.mxu0 0.0
        %324 = vmatpush1.msra.mxu0 0.0
        %325 = vmatprep.subr.mxu0 0.0
        %326 = vmatpush1.msra.mxu0 0.0
        %327 = vmatprep.subr.mxu0 0.0
        %328 = vmatpush1.msra.mxu0 0.0
        %329 = vmatprep.subr.mxu0 0.0
        %330 = vmatpush1.msra.mxu0 0.0
        %331 = vmatprep.subr.mxu0 0.0
        %332 = vmatpush1.msra.mxu0 0.0
        %333 = vmatprep.subr.mxu0 0.0
        %334 = vmatpush1.msra.mxu0 0.0
        %335 = vmatprep.subr.mxu0 0.0
        %336 = vmatpush1.msra.mxu0 0.0
        %337 = vmatprep.subr.mxu0 0.0
        %338 = vmatpush1.msra.mxu0 0.0
        %339 = vmatprep.subr.mxu0 0.0
        %340 = vmatpush1.msra.mxu0 0.0
        %341 = vmatprep.subr.mxu0 0.0
        %342 = vmatpush1.msra.mxu0 0.0
        %343 = vmatprep.subr.mxu0 0.0
        %344 = vmatpush1.msra.mxu0 0.0
        %345 = vmatprep.subr.mxu0 0.0
        %346 = vmatpush1.msra.mxu0 0.0
        %347 = vmatprep.subr.mxu0 0.0
        %348 = vmatpush1.msra.mxu0 0.0
        %349 = vmatprep.subr.mxu0 0.0
        %350 = vmatpush1.msra.mxu0 0.0
        %351 = vmatprep.subr.mxu0 0.0
        %352 = vmatpush1.msra.mxu0 0.0
        %353 = vmatprep.subr.mxu0 0.0
        %354 = vmatpush1.msra.mxu0 0.0
        %355 = vmatprep.subr.mxu0 0.0
        %356 = vmatpush1.msra.mxu0 0.0
        %357 = vmatprep.subr.mxu0 0.0
        %358 = vmatpush1.msra.mxu0 0.0
        %359 = vmatprep.subr.mxu0 0.0
        %360 = vmatpush1.msra.mxu0 0.0
        %361 = vmatprep.subr.mxu0 0.0
        %362 = vmatpush1.msra.mxu0 0.0
        %363 = vmatprep.mubr.f32.mxu0 0.0
        %364 = vmatmul.mubr.f32.gmra.mrb[0].mxu0 %v288
        %v365 = vpop.f32.mrb[0].mxu0
        %v366 = vadd.f32 %v269, %v365
        %v367 = vpop.f32.mrb[0].mxu0
        %v368 = vadd.f32 %v269, %v367
        %369 = vmatprep.mubr.f32.mxu0 0.0
        %370 = vmatmul.mubr.f32.gmra.mrb[0].mxu0 %v291
        %v371 = vpop.f32.mrb[0].mxu0
        %v372 = vadd.f32 %v274, %v371
        %v373 = vpop.f32.mrb[0].mxu0
        %v374 = vadd.f32 %v274, %v373
        %375 = vmatprep.mubr.f32.mxu0 0.0
        %376 = vmatmul.mubr.f32.gmra.mrb[0].mxu0 %v294
        %v377 = vpop.f32.mrb[0].mxu0
        %v378 = vadd.f32 %v279, %v377
        %v379 = vpop.f32.mrb[0].mxu0
        %v380 = vadd.f32 %v279, %v379
        %381 = vmatprep.mubr.f32.mxu0 0.0
        %382 = vmatmul.mubr.f32.gmra.mrb[0].mxu0 %v297
        %v383 = vpop.f32.mrb[0].mxu0
        %v384 = vadd.f32 %v284, %v383
        %v385 = vpop.f32.mrb[0].mxu0
        %v386 = vadd.f32 %v284, %v385
        %387 = vdwg.mxu0
        %vm388 = vcmp.gt.f32.partialorder %v366, 0.0
        %vm389 = vcmp.gt.f32.partialorder %v368, 0.0
        %vm390 = vcmp.gt.f32.partialorder %v372, 0.0
        %vm391 = vcmp.gt.f32.partialorder %v374, 0.0
        %vm392 = vcmp.gt.f32.partialorder %v378, 0.0
        %vm393 = vcmp.gt.f32.partialorder %v380, 0.0
        %vm394 = vcmp.gt.f32.partialorder %v384, 0.0
        %vm395 = vcmp.gt.f32.partialorder %v386, 0.0
        %v396 = vmin.f32 %v366, 0.0
        %v397 = vmin.f32 %v368, 0.0
        %v398 = vmin.f32 %v372, 0.0
        %v399 = vmin.f32 %v374, 0.0
        %v400 = vmin.f32 %v378, 0.0
        %v401 = vmin.f32 %v380, 0.0
        %v402 = vmin.f32 %v384, 0.0
        %v403 = vmin.f32 %v386, 0.0
        %v404 = vmul.f32 %v396, 1.442695
        %v405 = vpow.pop %v404
        %v406 = vmul.f32 %v397, 1.442695
        %v407 = vpow.pop %v406
        %v408 = vmul.f32 %v398, 1.442695
        %v409 = vpow.pop %v408
        %v410 = vmul.f32 %v399, 1.442695
        %v411 = vpow.pop %v410
        %v412 = vmul.f32 %v400, 1.442695
        %v413 = vpow.pop %v412
        %v414 = vmul.f32 %v401, 1.442695
        %v415 = vpow.pop %v414
        %v416 = vmul.f32 %v402, 1.442695
        %v417 = vpow.pop %v416
        %v418 = vmul.f32 %v403, 1.442695
        %v419 = vpow.pop %v418
        %v420 = vsub.f32 %v405, 1.0
        %v421 = vsub.f32 %v407, 1.0
        %v422 = vsub.f32 %v409, 1.0
        %v423 = vsub.f32 %v411, 1.0
        %v424 = vsub.f32 %v413, 1.0
        %v425 = vsub.f32 %v415, 1.0
        %v426 = vsub.f32 %v417, 1.0
        %v427 = vsub.f32 %v419, 1.0
        %v428 = vsel %vm388, %v366, %v420
        %v429 = vsel %vm389, %v368, %v421
        %v430 = vsel %vm390, %v372, %v422
        %v431 = vsel %vm391, %v374, %v423
        %v432 = vsel %vm392, %v378, %v424
        %v433 = vsel %vm393, %v380, %v425
        %v434 = vsel %vm394, %v384, %v426
        %v435 = vsel %vm395, %v386, %v427
        %v436 = vlaneseq
        %v437 = vshrl.u32 %v436, 7
        %v438 = vadd.s32 %v437, 8
        %v439 = vadd.s32 %v437, 16
        %v440 = vadd.s32 %v437, 24
        %v441 = vadd.s32 %v437, 32
        %v442 = vadd.s32 %v437, 40
        %v443 = vadd.s32 %v437, 48
        %v444 = vadd.s32 %v437, 56
        %v445 = vld [vmem:[%s3] sm:$0xff]
        %v446 = vld [vmem:[%s3 + $0x8] sm:$0xff]
        %v447 = vld [vmem:[%s3 + $0x10] sm:$0xff]
        %v448 = vld [vmem:[%s3 + $0x18] sm:$0xff]
        %v449 = vld [vmem:[%s3 + $0x20] sm:$0xff]
        %v450 = vld [vmem:[%s3 + $0x28] sm:$0xff]
        %v451 = vld [vmem:[%s3 + $0x30] sm:$0xff]
        %v452 = vld [vmem:[%s3 + $0x38] sm:$0xff]
        %vm453 = vcmask 261120
        %v455 = vsel %vm453, %v445, 0
        %v458 = vsel %vm453, %v446, 0
        %v461 = vsel %vm453, %v447, 0
        %v464 = vsel %vm453, %v448, 0
        %v467 = vsel %vm453, %v449, 0
        %v470 = vsel %vm453, %v450, 0
        %v473 = vsel %vm453, %v451, 0
        %v476 = vsel %vm453, %v452, 0
        %478 = vmatprep.subr.mxu0 %v429
        %479 = vmatpush1.msra.mxu0 %v428
        %480 = vmatprep.subr.mxu0 %v431
        %481 = vmatpush1.msra.mxu0 %v430
        %482 = vmatprep.subr.mxu0 %v433
        %483 = vmatpush1.msra.mxu0 %v432
        %484 = vmatprep.subr.mxu0 %v435
        %485 = vmatpush1.msra.mxu0 %v434
        %486 = vmatprep.subr.mxu0 0.0
        %487 = vmatpush1.msra.mxu0 0.0
        %488 = vmatprep.subr.mxu0 0.0
        %489 = vmatpush1.msra.mxu0 0.0
        %490 = vmatprep.subr.mxu0 0.0
        %491 = vmatpush1.msra.mxu0 0.0
        %492 = vmatprep.subr.mxu0 0.0
        %493 = vmatpush1.msra.mxu0 0.0
        %494 = vmatprep.subr.mxu0 0.0
        %495 = vmatpush1.msra.mxu0 0.0
        %496 = vmatprep.subr.mxu0 0.0
        %497 = vmatpush1.msra.mxu0 0.0
        %498 = vmatprep.subr.mxu0 0.0
        %499 = vmatpush1.msra.mxu0 0.0
        %500 = vmatprep.subr.mxu0 0.0
        %501 = vmatpush1.msra.mxu0 0.0
        %502 = vmatprep.subr.mxu0 0.0
        %503 = vmatpush1.msra.mxu0 0.0
        %504 = vmatprep.subr.mxu0 0.0
        %505 = vmatpush1.msra.mxu0 0.0
        %506 = vmatprep.subr.mxu0 0.0
        %507 = vmatpush1.msra.mxu0 0.0
        %508 = vmatprep.subr.mxu0 0.0
        %509 = vmatpush1.msra.mxu0 0.0
        %510 = vmatprep.subr.mxu0 0.0
        %511 = vmatpush1.msra.mxu0 0.0
        %512 = vmatprep.subr.mxu0 0.0
        %513 = vmatpush1.msra.mxu0 0.0
        %514 = vmatprep.subr.mxu0 0.0
        %515 = vmatpush1.msra.mxu0 0.0
        %516 = vmatprep.subr.mxu0 0.0
        %517 = vmatpush1.msra.mxu0 0.0
        %518 = vmatprep.subr.mxu0 0.0
        %519 = vmatpush1.msra.mxu0 0.0
        %520 = vmatprep.subr.mxu0 0.0
        %521 = vmatpush1.msra.mxu0 0.0
        %522 = vmatprep.subr.mxu0 0.0
        %523 = vmatpush1.msra.mxu0 0.0
        %524 = vmatprep.subr.mxu0 0.0
        %525 = vmatpush1.msra.mxu0 0.0
        %526 = vmatprep.subr.mxu0 0.0
        %527 = vmatpush1.msra.mxu0 0.0
        %528 = vmatprep.subr.mxu0 0.0
        %529 = vmatpush1.msra.mxu0 0.0
        %530 = vmatprep.subr.mxu0 0.0
        %531 = vmatpush1.msra.mxu0 0.0
        %532 = vmatprep.subr.mxu0 0.0
        %533 = vmatpush1.msra.mxu0 0.0
        %534 = vmatprep.subr.mxu0 0.0
        %535 = vmatpush1.msra.mxu0 0.0
        %536 = vmatprep.subr.mxu0 0.0
        %537 = vmatpush1.msra.mxu0 0.0
        %538 = vmatprep.subr.mxu0 0.0
        %539 = vmatpush1.msra.mxu0 0.0
        %540 = vmatprep.subr.mxu0 0.0
        %541 = vmatpush1.msra.mxu0 0.0
        %542 = vmatprep.mubr.f32.mxu0 0.0
        %543 = vmatmul.mubr.f32.gmra.mrb[0].mxu0 %v455
        %v544 = vpop.f32.mrb[0].mxu0
        %v545 = vadd.f32 0.0, %v544
        %v546 = vpop.f32.mrb[0].mxu0
        %v547 = vadd.f32 0.0, %v546
        %548 = vmatprep.mubr.f32.mxu0 0.0
        %549 = vmatmul.mubr.f32.gmra.mrb[0].mxu0 %v458
        %v550 = vpop.f32.mrb[0].mxu0
        %v551 = vadd.f32 0.0, %v550
        %v552 = vpop.f32.mrb[0].mxu0
        %v553 = vadd.f32 0.0, %v552
        %554 = vmatprep.mubr.f32.mxu0 0.0
        %555 = vmatmul.mubr.f32.gmra.mrb[0].mxu0 %v461
        %v556 = vpop.f32.mrb[0].mxu0
        %v557 = vadd.f32 0.0, %v556
        %v558 = vpop.f32.mrb[0].mxu0
        %v559 = vadd.f32 0.0, %v558
        %560 = vmatprep.mubr.f32.mxu0 0.0
        %561 = vmatmul.mubr.f32.gmra.mrb[0].mxu0 %v464
        %v562 = vpop.f32.mrb[0].mxu0
        %v563 = vadd.f32 0.0, %v562
        %v564 = vpop.f32.mrb[0].mxu0
        %v565 = vadd.f32 0.0, %v564
        %566 = vmatprep.mubr.f32.mxu0 0.0
        %567 = vmatmul.mubr.f32.gmra.mrb[0].mxu0 %v467
        %v568 = vpop.f32.mrb[0].mxu0
        %v569 = vadd.f32 0.0, %v568
        %v570 = vpop.f32.mrb[0].mxu0
        %v571 = vadd.f32 0.0, %v570
        %572 = vmatprep.mubr.f32.mxu0 0.0
        %573 = vmatmul.mubr.f32.gmra.mrb[0].mxu0 %v470
        %v574 = vpop.f32.mrb[0].mxu0
        %v575 = vadd.f32 0.0, %v574
        %v576 = vpop.f32.mrb[0].mxu0
        %v577 = vadd.f32 0.0, %v576
        %578 = vmatprep.mubr.f32.mxu0 0.0
        %579 = vmatmul.mubr.f32.gmra.mrb[0].mxu0 %v473
        %v580 = vpop.f32.mrb[0].mxu0
        %v581 = vadd.f32 0.0, %v580
        %v582 = vpop.f32.mrb[0].mxu0
        %v583 = vadd.f32 0.0, %v582
        %584 = vmatprep.mubr.f32.mxu0 0.0
        %585 = vmatmul.mubr.f32.gmra.mrb[0].mxu0 %v476
        %v586 = vpop.f32.mrb[0].mxu0
        %v587 = vadd.f32 0.0, %v586
        %v588 = vpop.f32.mrb[0].mxu0
        %v589 = vadd.f32 0.0, %v588
        %590 = vdwg.mxu0
        %v591 = vld [vmem:[%s4] sm:$0xff]
        %v592 = vld [vmem:[%s4 + $0x8] sm:$0xff]
        %v593 = vld [vmem:[%s4 + $0x10] sm:$0xff]
        %v594 = vld [vmem:[%s4 + $0x18] sm:$0xff]
        %v595 = vld [vmem:[%s4 + $0x20] sm:$0xff]
        %v596 = vld [vmem:[%s4 + $0x28] sm:$0xff]
        %v597 = vld [vmem:[%s4 + $0x30] sm:$0xff]
        %v598 = vld [vmem:[%s4 + $0x38] sm:$0xff]
        %600 = vset.pattern.permute.xlu0 0
        %601 = vperm.xlu0 %600, %v591
        %v602 = vpop.permute.xlu0 %601
        %605 = vset.pattern.permute.xlu0 0
        %606 = vperm.xlu0 %605, %v592
        %v607 = vpop.permute.xlu0 %606
        %610 = vset.pattern.permute.xlu0 0
        %611 = vperm.xlu0 %610, %v593
        %v612 = vpop.permute.xlu0 %611
        %615 = vset.pattern.permute.xlu0 0
        %616 = vperm.xlu0 %615, %v594
        %v617 = vpop.permute.xlu0 %616
        %620 = vset.pattern.permute.xlu0 0
        %621 = vperm.xlu0 %620, %v595
        %v622 = vpop.permute.xlu0 %621
        %625 = vset.pattern.permute.xlu0 0
        %626 = vperm.xlu0 %625, %v596
        %v627 = vpop.permute.xlu0 %626
        %630 = vset.pattern.permute.xlu0 0
        %631 = vperm.xlu0 %630, %v597
        %v632 = vpop.permute.xlu0 %631
        %635 = vset.pattern.permute.xlu0 0
        %636 = vperm.xlu0 %635, %v598
        %v637 = vpop.permute.xlu0 %636
        %v639 = vsub.f32 %v602, %v545
        %v640 = vsub.f32 %v602, %v547
        %v641 = vsub.f32 %v607, %v551
        %v642 = vsub.f32 %v607, %v553
        %v643 = vsub.f32 %v612, %v557
        %v644 = vsub.f32 %v612, %v559
        %v645 = vsub.f32 %v617, %v563
        %v646 = vsub.f32 %v617, %v565
        %v647 = vsub.f32 %v622, %v569
        %v648 = vsub.f32 %v622, %v571
        %v649 = vsub.f32 %v627, %v575
        %v650 = vsub.f32 %v627, %v577
        %v651 = vsub.f32 %v632, %v581
        %v652 = vsub.f32 %v632, %v583
        %v653 = vsub.f32 %v637, %v587
        %v654 = vsub.f32 %v637, %v589
        %v671 = vshra.s32 %v639, 31
        %v672 = vshra.s32 %v640, 31
        %v673 = vshra.s32 %v641, 31
        %v674 = vshra.s32 %v642, 31
        %v675 = vshra.s32 %v643, 31
        %v676 = vshra.s32 %v644, 31
        %v677 = vshra.s32 %v645, 31
        %v678 = vshra.s32 %v646, 31
        %v679 = vshra.s32 %v647, 31
        %v680 = vshra.s32 %v648, 31
        %v681 = vshra.s32 %v649, 31
        %v682 = vshra.s32 %v650, 31
        %v683 = vshra.s32 %v651, 31
        %v684 = vshra.s32 %v652, 31
        %v685 = vshra.s32 %v653, 31
        %v686 = vshra.s32 %v654, 31
        %v687 = vand.u32 %v671, 2147483647
        %v688 = vand.u32 %v672, 2147483647
        %v689 = vand.u32 %v673, 2147483647
        %v690 = vand.u32 %v674, 2147483647
        %v691 = vand.u32 %v675, 2147483647
        %v692 = vand.u32 %v676, 2147483647
        %v693 = vand.u32 %v677, 2147483647
        %v694 = vand.u32 %v678, 2147483647
        %v695 = vand.u32 %v679, 2147483647
        %v696 = vand.u32 %v680, 2147483647
        %v697 = vand.u32 %v681, 2147483647
        %v698 = vand.u32 %v682, 2147483647
        %v699 = vand.u32 %v683, 2147483647
        %v700 = vand.u32 %v684, 2147483647
        %v701 = vand.u32 %v685, 2147483647
        %v702 = vand.u32 %v686, 2147483647
        %v703 = vxor.u32 %v639, %v687
        %v704 = vxor.u32 %v640, %v688
        %v705 = vxor.u32 %v641, %v689
        %v706 = vxor.u32 %v642, %v690
        %v707 = vxor.u32 %v643, %v691
        %v708 = vxor.u32 %v644, %v692
        %v709 = vxor.u32 %v645, %v693
        %v710 = vxor.u32 %v646, %v694
        %v711 = vxor.u32 %v647, %v695
        %v712 = vxor.u32 %v648, %v696
        %v713 = vxor.u32 %v649, %v697
        %v714 = vxor.u32 %v650, %v698
        %v715 = vxor.u32 %v651, %v699
        %v716 = vxor.u32 %v652, %v700
        %v717 = vxor.u32 %v653, %v701
        %v718 = vxor.u32 %v654, %v702
        %v719 = vand.u32 %v703, 4294967232
        %v720 = vand.u32 %v704, 4294967232
        %v721 = vand.u32 %v705, 4294967232
        %v722 = vand.u32 %v706, 4294967232
        %v723 = vand.u32 %v707, 4294967232
        %v724 = vand.u32 %v708, 4294967232
        %v725 = vand.u32 %v709, 4294967232
        %v726 = vand.u32 %v710, 4294967232
        %v727 = vand.u32 %v711, 4294967232
        %v728 = vand.u32 %v712, 4294967232
        %v729 = vand.u32 %v713, 4294967232
        %v730 = vand.u32 %v714, 4294967232
        %v731 = vand.u32 %v715, 4294967232
        %v732 = vand.u32 %v716, 4294967232
        %v733 = vand.u32 %v717, 4294967232
        %v734 = vand.u32 %v718, 4294967232
        %v735 = vor.u32 %v719, %v437
        %v736 = vor.u32 %v720, %v437
        %v737 = vor.u32 %v721, %v438
        %v738 = vor.u32 %v722, %v438
        %v739 = vor.u32 %v723, %v439
        %v740 = vor.u32 %v724, %v439
        %v741 = vor.u32 %v725, %v440
        %v742 = vor.u32 %v726, %v440
        %v743 = vor.u32 %v727, %v441
        %v744 = vor.u32 %v728, %v441
        %v745 = vor.u32 %v729, %v442
        %v746 = vor.u32 %v730, %v442
        %v747 = vor.u32 %v731, %v443
        %v748 = vor.u32 %v732, %v443
        %v749 = vor.u32 %v733, %v444
        %v750 = vor.u32 %v734, %v444
        %vm751 = vcmp.lt.s32.totalorder %v735, %v739
        %v752 = vsel %vm751, %v735, %v739
        %vm753 = vcmp.lt.s32.totalorder %v737, %v741
        %v754 = vsel %vm753, %v737, %v741
        %vm755 = vcmp.lt.s32.totalorder %v752, %v743
        %v756 = vsel %vm755, %v752, %v743
        %vm757 = vcmp.lt.s32.totalorder %v754, %v745
        %v758 = vsel %vm757, %v754, %v745
        %vm759 = vcmp.lt.s32.totalorder %v756, %v747
        %v760 = vsel %vm759, %v756, %v747
        %vm761 = vcmp.lt.s32.totalorder %v758, %v749
        %v762 = vsel %vm761, %v758, %v749
        %vm763 = vcmp.lt.s32.totalorder %v760, %v762
        %v764 = vsel %vm763, %v760, %v762
        %v765 = vrot.slane %v764, 4
        %vm766 = vcmp.lt.s32.totalorder %v764, %v765
        %v767 = vsel %vm766, %v764, %v765
        %v768 = vrot.slane %v767, 2
        %vm769 = vcmp.lt.s32.totalorder %v767, %v768
        %v770 = vsel %vm769, %v767, %v768
        %v771 = vrot.slane %v770, 1
        %vm772 = vcmp.lt.s32.totalorder %v770, %v771
        %v773 = vsel %vm772, %v770, %v771
        %vm774 = vcmp.lt.s32.totalorder %v736, %v740
        %v775 = vsel %vm774, %v736, %v740
        %vm776 = vcmp.lt.s32.totalorder %v738, %v742
        %v777 = vsel %vm776, %v738, %v742
        %vm778 = vcmp.lt.s32.totalorder %v775, %v744
        %v779 = vsel %vm778, %v775, %v744
        %vm780 = vcmp.lt.s32.totalorder %v777, %v746
        %v781 = vsel %vm780, %v777, %v746
        %vm782 = vcmp.lt.s32.totalorder %v779, %v748
        %v783 = vsel %vm782, %v779, %v748
        %vm784 = vcmp.lt.s32.totalorder %v781, %v750
        %v785 = vsel %vm784, %v781, %v750
        %vm786 = vcmp.lt.s32.totalorder %v783, %v785
        %v787 = vsel %vm786, %v783, %v785
        %v788 = vrot.slane %v787, 4
        %vm789 = vcmp.lt.s32.totalorder %v787, %v788
        %v790 = vsel %vm789, %v787, %v788
        %v791 = vrot.slane %v790, 2
        %vm792 = vcmp.lt.s32.totalorder %v790, %v791
        %v793 = vsel %vm792, %v790, %v791
        %v794 = vrot.slane %v793, 1
        %vm795 = vcmp.lt.s32.totalorder %v793, %v794
        %v796 = vsel %vm795, %v793, %v794
        %v797 = vand.u32 %v773, 63
        %v798 = vand.u32 %v796, 63
        %vm799 = vcmp.eq.s32.totalorder %v437, %v797
        %vm800 = vcmp.eq.s32.totalorder %v437, %v798
        %vm801 = vcmp.eq.s32.totalorder %v438, %v797
        %vm802 = vcmp.eq.s32.totalorder %v438, %v798
        %vm803 = vcmp.eq.s32.totalorder %v439, %v797
        %vm804 = vcmp.eq.s32.totalorder %v439, %v798
        %vm805 = vcmp.eq.s32.totalorder %v440, %v797
        %vm806 = vcmp.eq.s32.totalorder %v440, %v798
        %vm807 = vcmp.eq.s32.totalorder %v441, %v797
        %vm808 = vcmp.eq.s32.totalorder %v441, %v798
        %vm809 = vcmp.eq.s32.totalorder %v442, %v797
        %vm810 = vcmp.eq.s32.totalorder %v442, %v798
        %vm811 = vcmp.eq.s32.totalorder %v443, %v797
        %vm812 = vcmp.eq.s32.totalorder %v443, %v798
        %vm813 = vcmp.eq.s32.totalorder %v444, %v797
        %vm814 = vcmp.eq.s32.totalorder %v444, %v798
        %v815 = vsel %vm799, 1, 0
        %v816 = vsel %vm800, 1, 0
        %v817 = vsel %vm801, 1, 0
        %v818 = vsel %vm802, 1, 0
        %v819 = vsel %vm803, 1, 0
        %v820 = vsel %vm804, 1, 0
        %v821 = vsel %vm805, 1, 0
        %v822 = vsel %vm806, 1, 0
        %v823 = vsel %vm807, 1, 0
        %v824 = vsel %vm808, 1, 0
        %v825 = vsel %vm809, 1, 0
        %v826 = vsel %vm810, 1, 0
        %v827 = vsel %vm811, 1, 0
        %v828 = vsel %vm812, 1, 0
        %v829 = vsel %vm813, 1, 0
        %v830 = vsel %vm814, 1, 0
        %v831 = vcvt.s32.f32 %v815
        %v832 = vcvt.s32.f32 %v816
        %v833 = vcvt.s32.f32 %v817
        %v834 = vcvt.s32.f32 %v818
        %v835 = vcvt.s32.f32 %v819
        %v836 = vcvt.s32.f32 %v820
        %v837 = vcvt.s32.f32 %v821
        %v838 = vcvt.s32.f32 %v822
        %v839 = vcvt.s32.f32 %v823
        %v840 = vcvt.s32.f32 %v824
        %v841 = vcvt.s32.f32 %v825
        %v842 = vcvt.s32.f32 %v826
        %v843 = vcvt.s32.f32 %v827
        %v844 = vcvt.s32.f32 %v828
        %v845 = vcvt.s32.f32 %v829
        %v846 = vcvt.s32.f32 %v830
        %847 = vxpose.xlu0.b32.start [1/16] %v445, 128
        %848 = vxpose.xlu0.b32.cont [2/16] %v446, 128
        %849 = vxpose.xlu0.b32.cont [3/16] %v447, 128
        %850 = vxpose.xlu0.b32.cont [4/16] %v448, 128
        %851 = vxpose.xlu0.b32.cont [5/16] %v449, 128
        %852 = vxpose.xlu0.b32.cont [6/16] %v450, 128
        %853 = vxpose.xlu0.b32.cont [7/16] %v451, 128
        %854 = vxpose.xlu0.b32.cont [8/16] %v452, 128
        %855 = vxpose.xlu0.b32.cont [9/16] 0.0, 128
        %856 = vxpose.xlu0.b32.cont [10/16] 0.0, 128
        %857 = vxpose.xlu0.b32.cont [11/16] 0.0, 128
        %858 = vxpose.xlu0.b32.cont [12/16] 0.0, 128
        %859 = vxpose.xlu0.b32.cont [13/16] 0.0, 128
        %860 = vxpose.xlu0.b32.cont [14/16] 0.0, 128
        %861 = vxpose.xlu0.b32.cont [15/16] 0.0, 128
        %862 = vxpose.xlu0.b32.end [16/16] 0.0, 128
        %v863 = vpop.trf.xlu0
        %v864 = vpop.trf.xlu0
        %v865 = vpop.trf.xlu0
        %v866 = vpop.trf.xlu0
        %v867 = vpop.trf.xlu0
        %v868 = vpop.trf.xlu0
        %v869 = vpop.trf.xlu0
        %v870 = vpop.trf.xlu0
        %v871 = vpop.trf.xlu0
        %v872 = vpop.trf.xlu0
        %v873 = vpop.trf.xlu0
        %v874 = vpop.trf.xlu0
        %v875 = vpop.trf.xlu0
        %v876 = vpop.trf.xlu0
        %v877 = vpop.trf.xlu0
        %v878 = vpop.trf.xlu0
        %vm879 = vcmask 523264
        %v881 = vsel %vm879, %v863, 0
        %v884 = vsel %vm879, %v864, 0
        %v887 = vsel %vm879, %v865, 0
        %v890 = vsel %vm879, %v866, 0
        %892 = vmatprep.subr.mxu0 %v832
        %893 = vmatpush1.msra.mxu0 %v831
        %894 = vmatprep.subr.mxu0 %v834
        %895 = vmatpush1.msra.mxu0 %v833
        %896 = vmatprep.subr.mxu0 %v836
        %897 = vmatpush1.msra.mxu0 %v835
        %898 = vmatprep.subr.mxu0 %v838
        %899 = vmatpush1.msra.mxu0 %v837
        %900 = vmatprep.subr.mxu0 %v840
        %901 = vmatpush1.msra.mxu0 %v839
        %902 = vmatprep.subr.mxu0 %v842
        %903 = vmatpush1.msra.mxu0 %v841
        %904 = vmatprep.subr.mxu0 %v844
        %905 = vmatpush1.msra.mxu0 %v843
        %906 = vmatprep.subr.mxu0 %v846
        %907 = vmatpush1.msra.mxu0 %v845
        %908 = vmatprep.subr.mxu0 0.0
        %909 = vmatpush1.msra.mxu0 0.0
        %910 = vmatprep.subr.mxu0 0.0
        %911 = vmatpush1.msra.mxu0 0.0
        %912 = vmatprep.subr.mxu0 0.0
        %913 = vmatpush1.msra.mxu0 0.0
        %914 = vmatprep.subr.mxu0 0.0
        %915 = vmatpush1.msra.mxu0 0.0
        %916 = vmatprep.subr.mxu0 0.0
        %917 = vmatpush1.msra.mxu0 0.0
        %918 = vmatprep.subr.mxu0 0.0
        %919 = vmatpush1.msra.mxu0 0.0
        %920 = vmatprep.subr.mxu0 0.0
        %921 = vmatpush1.msra.mxu0 0.0
        %922 = vmatprep.subr.mxu0 0.0
        %923 = vmatpush1.msra.mxu0 0.0
        %924 = vmatprep.subr.mxu0 0.0
        %925 = vmatpush1.msra.mxu0 0.0
        %926 = vmatprep.subr.mxu0 0.0
        %927 = vmatpush1.msra.mxu0 0.0
        %928 = vmatprep.subr.mxu0 0.0
        %929 = vmatpush1.msra.mxu0 0.0
        %930 = vmatprep.subr.mxu0 0.0
        %931 = vmatpush1.msra.mxu0 0.0
        %932 = vmatprep.subr.mxu0 0.0
        %933 = vmatpush1.msra.mxu0 0.0
        %934 = vmatprep.subr.mxu0 0.0
        %935 = vmatpush1.msra.mxu0 0.0
        %936 = vmatprep.subr.mxu0 0.0
        %937 = vmatpush1.msra.mxu0 0.0
        %938 = vmatprep.subr.mxu0 0.0
        %939 = vmatpush1.msra.mxu0 0.0
        %940 = vmatprep.subr.mxu0 0.0
        %941 = vmatpush1.msra.mxu0 0.0
        %942 = vmatprep.subr.mxu0 0.0
        %943 = vmatpush1.msra.mxu0 0.0
        %944 = vmatprep.subr.mxu0 0.0
        %945 = vmatpush1.msra.mxu0 0.0
        %946 = vmatprep.subr.mxu0 0.0
        %947 = vmatpush1.msra.mxu0 0.0
        %948 = vmatprep.subr.mxu0 0.0
        %949 = vmatpush1.msra.mxu0 0.0
        %950 = vmatprep.subr.mxu0 0.0
        %951 = vmatpush1.msra.mxu0 0.0
        %952 = vmatprep.subr.mxu0 0.0
        %953 = vmatpush1.msra.mxu0 0.0
        %954 = vmatprep.subr.mxu0 0.0
        %955 = vmatpush1.msra.mxu0 0.0
        %956 = vmatprep.mubr.f32.mxu0 0.0
        %957 = vmatmul.mubr.f32.gmra.mrb[0].mxu0 %v881
        %v958 = vpop.f32.mrb[0].mxu0
        %v959 = vadd.f32 0.0, %v958
        %v960 = vpop.f32.mrb[0].mxu0
        %v961 = vadd.f32 0.0, %v960
        %962 = vmatprep.mubr.f32.mxu0 0.0
        %963 = vmatmul.mubr.f32.gmra.mrb[0].mxu0 %v884
        %v964 = vpop.f32.mrb[0].mxu0
        %v965 = vadd.f32 0.0, %v964
        %v966 = vpop.f32.mrb[0].mxu0
        %v967 = vadd.f32 0.0, %v966
        %968 = vmatprep.mubr.f32.mxu0 0.0
        %969 = vmatmul.mubr.f32.gmra.mrb[0].mxu0 %v887
        %v970 = vpop.f32.mrb[0].mxu0
        %v971 = vadd.f32 0.0, %v970
        %v972 = vpop.f32.mrb[0].mxu0
        %v973 = vadd.f32 0.0, %v972
        %974 = vmatprep.mubr.f32.mxu0 0.0
        %975 = vmatmul.mubr.f32.gmra.mrb[0].mxu0 %v890
        %v976 = vpop.f32.mrb[0].mxu0
        %v977 = vadd.f32 0.0, %v976
        %v978 = vpop.f32.mrb[0].mxu0
        %v979 = vadd.f32 0.0, %v978
        %980 = vdwg.mxu0
        %v981 = vsub.f32 %v428, %v959
        %v982 = vsub.f32 %v429, %v961
        %v983 = vsub.f32 %v430, %v965
        %v984 = vsub.f32 %v431, %v967
        %v985 = vsub.f32 %v432, %v971
        %v986 = vsub.f32 %v433, %v973
        %v987 = vsub.f32 %v434, %v977
        %v988 = vsub.f32 %v435, %v979
        %s989 = scalar_lea.vmem %s3, 64
        %v990 = vld [vmem:[%s989] sm:$0xff]
        %v991 = vld [vmem:[%s989 + $0x8] sm:$0xff]
        %v992 = vld [vmem:[%s989 + $0x10] sm:$0xff]
        %v993 = vld [vmem:[%s989 + $0x18] sm:$0xff]
        %v994 = vld [vmem:[%s989 + $0x20] sm:$0xff]
        %v995 = vld [vmem:[%s989 + $0x28] sm:$0xff]
        %v996 = vld [vmem:[%s989 + $0x30] sm:$0xff]
        %v997 = vld [vmem:[%s989 + $0x38] sm:$0xff]
        %v999 = vsel %vm453, %v990, 0
        %v1002 = vsel %vm453, %v991, 0
        %v1005 = vsel %vm453, %v992, 0
        %v1008 = vsel %vm453, %v993, 0
        %v1011 = vsel %vm453, %v994, 0
        %v1014 = vsel %vm453, %v995, 0
        %v1017 = vsel %vm453, %v996, 0
        %v1020 = vsel %vm453, %v997, 0
        %1022 = vmatprep.subr.mxu0 %v982
        %1023 = vmatpush1.msra.mxu0 %v981
        %1024 = vmatprep.subr.mxu0 %v984
        %1025 = vmatpush1.msra.mxu0 %v983
        %1026 = vmatprep.subr.mxu0 %v986
        %1027 = vmatpush1.msra.mxu0 %v985
        %1028 = vmatprep.subr.mxu0 %v988
        %1029 = vmatpush1.msra.mxu0 %v987
        %1030 = vmatprep.subr.mxu0 0.0
        %1031 = vmatpush1.msra.mxu0 0.0
        %1032 = vmatprep.subr.mxu0 0.0
        %1033 = vmatpush1.msra.mxu0 0.0
        %1034 = vmatprep.subr.mxu0 0.0
        %1035 = vmatpush1.msra.mxu0 0.0
        %1036 = vmatprep.subr.mxu0 0.0
        %1037 = vmatpush1.msra.mxu0 0.0
        %1038 = vmatprep.subr.mxu0 0.0
        %1039 = vmatpush1.msra.mxu0 0.0
        %1040 = vmatprep.subr.mxu0 0.0
        %1041 = vmatpush1.msra.mxu0 0.0
        %1042 = vmatprep.subr.mxu0 0.0
        %1043 = vmatpush1.msra.mxu0 0.0
        %1044 = vmatprep.subr.mxu0 0.0
        %1045 = vmatpush1.msra.mxu0 0.0
        %1046 = vmatprep.subr.mxu0 0.0
        %1047 = vmatpush1.msra.mxu0 0.0
        %1048 = vmatprep.subr.mxu0 0.0
        %1049 = vmatpush1.msra.mxu0 0.0
        %1050 = vmatprep.subr.mxu0 0.0
        %1051 = vmatpush1.msra.mxu0 0.0
        %1052 = vmatprep.subr.mxu0 0.0
        %1053 = vmatpush1.msra.mxu0 0.0
        %1054 = vmatprep.subr.mxu0 0.0
        %1055 = vmatpush1.msra.mxu0 0.0
        %1056 = vmatprep.subr.mxu0 0.0
        %1057 = vmatpush1.msra.mxu0 0.0
        %1058 = vmatprep.subr.mxu0 0.0
        %1059 = vmatpush1.msra.mxu0 0.0
        %1060 = vmatprep.subr.mxu0 0.0
        %1061 = vmatpush1.msra.mxu0 0.0
        %1062 = vmatprep.subr.mxu0 0.0
        %1063 = vmatpush1.msra.mxu0 0.0
        %1064 = vmatprep.subr.mxu0 0.0
        %1065 = vmatpush1.msra.mxu0 0.0
        %1066 = vmatprep.subr.mxu0 0.0
        %1067 = vmatpush1.msra.mxu0 0.0
        %1068 = vmatprep.subr.mxu0 0.0
        %1069 = vmatpush1.msra.mxu0 0.0
        %1070 = vmatprep.subr.mxu0 0.0
        %1071 = vmatpush1.msra.mxu0 0.0
        %1072 = vmatprep.subr.mxu0 0.0
        %1073 = vmatpush1.msra.mxu0 0.0
        %1074 = vmatprep.subr.mxu0 0.0
        %1075 = vmatpush1.msra.mxu0 0.0
        %1076 = vmatprep.subr.mxu0 0.0
        %1077 = vmatpush1.msra.mxu0 0.0
        %1078 = vmatprep.subr.mxu0 0.0
        %1079 = vmatpush1.msra.mxu0 0.0
        %1080 = vmatprep.subr.mxu0 0.0
        %1081 = vmatpush1.msra.mxu0 0.0
        %1082 = vmatprep.subr.mxu0 0.0
        %1083 = vmatpush1.msra.mxu0 0.0
        %1084 = vmatprep.subr.mxu0 0.0
        %1085 = vmatpush1.msra.mxu0 0.0
        %1086 = vmatprep.mubr.f32.mxu0 0.0
        %1087 = vmatmul.mubr.f32.gmra.mrb[0].mxu0 %v999
        %v1088 = vpop.f32.mrb[0].mxu0
        %v1089 = vadd.f32 0.0, %v1088
        %v1090 = vpop.f32.mrb[0].mxu0
        %v1091 = vadd.f32 0.0, %v1090
        %1092 = vmatprep.mubr.f32.mxu0 0.0
        %1093 = vmatmul.mubr.f32.gmra.mrb[0].mxu0 %v1002
        %v1094 = vpop.f32.mrb[0].mxu0
        %v1095 = vadd.f32 0.0, %v1094
        %v1096 = vpop.f32.mrb[0].mxu0
        %v1097 = vadd.f32 0.0, %v1096
        %1098 = vmatprep.mubr.f32.mxu0 0.0
        %1099 = vmatmul.mubr.f32.gmra.mrb[0].mxu0 %v1005
        %v1100 = vpop.f32.mrb[0].mxu0
        %v1101 = vadd.f32 0.0, %v1100
        %v1102 = vpop.f32.mrb[0].mxu0
        %v1103 = vadd.f32 0.0, %v1102
        %1104 = vmatprep.mubr.f32.mxu0 0.0
        %1105 = vmatmul.mubr.f32.gmra.mrb[0].mxu0 %v1008
        %v1106 = vpop.f32.mrb[0].mxu0
        %v1107 = vadd.f32 0.0, %v1106
        %v1108 = vpop.f32.mrb[0].mxu0
        %v1109 = vadd.f32 0.0, %v1108
        %1110 = vmatprep.mubr.f32.mxu0 0.0
        %1111 = vmatmul.mubr.f32.gmra.mrb[0].mxu0 %v1011
        %v1112 = vpop.f32.mrb[0].mxu0
        %v1113 = vadd.f32 0.0, %v1112
        %v1114 = vpop.f32.mrb[0].mxu0
        %v1115 = vadd.f32 0.0, %v1114
        %1116 = vmatprep.mubr.f32.mxu0 0.0
        %1117 = vmatmul.mubr.f32.gmra.mrb[0].mxu0 %v1014
        %v1118 = vpop.f32.mrb[0].mxu0
        %v1119 = vadd.f32 0.0, %v1118
        %v1120 = vpop.f32.mrb[0].mxu0
        %v1121 = vadd.f32 0.0, %v1120
        %1122 = vmatprep.mubr.f32.mxu0 0.0
        %1123 = vmatmul.mubr.f32.gmra.mrb[0].mxu0 %v1017
        %v1124 = vpop.f32.mrb[0].mxu0
        %v1125 = vadd.f32 0.0, %v1124
        %v1126 = vpop.f32.mrb[0].mxu0
        %v1127 = vadd.f32 0.0, %v1126
        %1128 = vmatprep.mubr.f32.mxu0 0.0
        %1129 = vmatmul.mubr.f32.gmra.mrb[0].mxu0 %v1020
        %v1130 = vpop.f32.mrb[0].mxu0
        %v1131 = vadd.f32 0.0, %v1130
        %v1132 = vpop.f32.mrb[0].mxu0
        %v1133 = vadd.f32 0.0, %v1132
        %1134 = vdwg.mxu0
        %s1135 = scalar_lea.vmem %s4, 64
        %v1136 = vld [vmem:[%s1135] sm:$0xff]
        %v1137 = vld [vmem:[%s1135 + $0x8] sm:$0xff]
        %v1138 = vld [vmem:[%s1135 + $0x10] sm:$0xff]
        %v1139 = vld [vmem:[%s1135 + $0x18] sm:$0xff]
        %v1140 = vld [vmem:[%s1135 + $0x20] sm:$0xff]
        %v1141 = vld [vmem:[%s1135 + $0x28] sm:$0xff]
        %v1142 = vld [vmem:[%s1135 + $0x30] sm:$0xff]
        %v1143 = vld [vmem:[%s1135 + $0x38] sm:$0xff]
        %1145 = vset.pattern.permute.xlu0 0
        %1146 = vperm.xlu0 %1145, %v1136
        %v1147 = vpop.permute.xlu0 %1146
        %1150 = vset.pattern.permute.xlu0 0
        %1151 = vperm.xlu0 %1150, %v1137
        %v1152 = vpop.permute.xlu0 %1151
        %1155 = vset.pattern.permute.xlu0 0
        %1156 = vperm.xlu0 %1155, %v1138
        %v1157 = vpop.permute.xlu0 %1156
        %1160 = vset.pattern.permute.xlu0 0
        %1161 = vperm.xlu0 %1160, %v1139
        %v1162 = vpop.permute.xlu0 %1161
        %1165 = vset.pattern.permute.xlu0 0
        %1166 = vperm.xlu0 %1165, %v1140
        %v1167 = vpop.permute.xlu0 %1166
        %1170 = vset.pattern.permute.xlu0 0
        %1171 = vperm.xlu0 %1170, %v1141
        %v1172 = vpop.permute.xlu0 %1171
        %1175 = vset.pattern.permute.xlu0 0
        %1176 = vperm.xlu0 %1175, %v1142
        %v1177 = vpop.permute.xlu0 %1176
        %1180 = vset.pattern.permute.xlu0 0
        %1181 = vperm.xlu0 %1180, %v1143
        %v1182 = vpop.permute.xlu0 %1181
        %v1184 = vsub.f32 %v1147, %v1089
        %v1185 = vsub.f32 %v1147, %v1091
        %v1186 = vsub.f32 %v1152, %v1095
        %v1187 = vsub.f32 %v1152, %v1097
        %v1188 = vsub.f32 %v1157, %v1101
        %v1189 = vsub.f32 %v1157, %v1103
        %v1190 = vsub.f32 %v1162, %v1107
        %v1191 = vsub.f32 %v1162, %v1109
        %v1192 = vsub.f32 %v1167, %v1113
        %v1193 = vsub.f32 %v1167, %v1115
        %v1194 = vsub.f32 %v1172, %v1119
        %v1195 = vsub.f32 %v1172, %v1121
        %v1196 = vsub.f32 %v1177, %v1125
        %v1197 = vsub.f32 %v1177, %v1127
        %v1198 = vsub.f32 %v1182, %v1131
        %v1199 = vsub.f32 %v1182, %v1133
        %v1216 = vshra.s32 %v1184, 31
        %v1217 = vshra.s32 %v1185, 31
        %v1218 = vshra.s32 %v1186, 31
        %v1219 = vshra.s32 %v1187, 31
        %v1220 = vshra.s32 %v1188, 31
        %v1221 = vshra.s32 %v1189, 31
        %v1222 = vshra.s32 %v1190, 31
        %v1223 = vshra.s32 %v1191, 31
        %v1224 = vshra.s32 %v1192, 31
        %v1225 = vshra.s32 %v1193, 31
        %v1226 = vshra.s32 %v1194, 31
        %v1227 = vshra.s32 %v1195, 31
        %v1228 = vshra.s32 %v1196, 31
        %v1229 = vshra.s32 %v1197, 31
        %v1230 = vshra.s32 %v1198, 31
        %v1231 = vshra.s32 %v1199, 31
        %v1232 = vand.u32 %v1216, 2147483647
        %v1233 = vand.u32 %v1217, 2147483647
        %v1234 = vand.u32 %v1218, 2147483647
        %v1235 = vand.u32 %v1219, 2147483647
        %v1236 = vand.u32 %v1220, 2147483647
        %v1237 = vand.u32 %v1221, 2147483647
        %v1238 = vand.u32 %v1222, 2147483647
        %v1239 = vand.u32 %v1223, 2147483647
        %v1240 = vand.u32 %v1224, 2147483647
        %v1241 = vand.u32 %v1225, 2147483647
        %v1242 = vand.u32 %v1226, 2147483647
        %v1243 = vand.u32 %v1227, 2147483647
        %v1244 = vand.u32 %v1228, 2147483647
        %v1245 = vand.u32 %v1229, 2147483647
        %v1246 = vand.u32 %v1230, 2147483647
        %v1247 = vand.u32 %v1231, 2147483647
        %v1248 = vxor.u32 %v1184, %v1232
        %v1249 = vxor.u32 %v1185, %v1233
        %v1250 = vxor.u32 %v1186, %v1234
        %v1251 = vxor.u32 %v1187, %v1235
        %v1252 = vxor.u32 %v1188, %v1236
        %v1253 = vxor.u32 %v1189, %v1237
        %v1254 = vxor.u32 %v1190, %v1238
        %v1255 = vxor.u32 %v1191, %v1239
        %v1256 = vxor.u32 %v1192, %v1240
        %v1257 = vxor.u32 %v1193, %v1241
        %v1258 = vxor.u32 %v1194, %v1242
        %v1259 = vxor.u32 %v1195, %v1243
        %v1260 = vxor.u32 %v1196, %v1244
        %v1261 = vxor.u32 %v1197, %v1245
        %v1262 = vxor.u32 %v1198, %v1246
        %v1263 = vxor.u32 %v1199, %v1247
        %v1264 = vand.u32 %v1248, 4294967232
        %v1265 = vand.u32 %v1249, 4294967232
        %v1266 = vand.u32 %v1250, 4294967232
        %v1267 = vand.u32 %v1251, 4294967232
        %v1268 = vand.u32 %v1252, 4294967232
        %v1269 = vand.u32 %v1253, 4294967232
        %v1270 = vand.u32 %v1254, 4294967232
        %v1271 = vand.u32 %v1255, 4294967232
        %v1272 = vand.u32 %v1256, 4294967232
        %v1273 = vand.u32 %v1257, 4294967232
        %v1274 = vand.u32 %v1258, 4294967232
        %v1275 = vand.u32 %v1259, 4294967232
        %v1276 = vand.u32 %v1260, 4294967232
        %v1277 = vand.u32 %v1261, 4294967232
        %v1278 = vand.u32 %v1262, 4294967232
        %v1279 = vand.u32 %v1263, 4294967232
        %v1280 = vor.u32 %v1264, %v437
        %v1281 = vor.u32 %v1265, %v437
        %v1282 = vor.u32 %v1266, %v438
        %v1283 = vor.u32 %v1267, %v438
        %v1284 = vor.u32 %v1268, %v439
        %v1285 = vor.u32 %v1269, %v439
        %v1286 = vor.u32 %v1270, %v440
        %v1287 = vor.u32 %v1271, %v440
        %v1288 = vor.u32 %v1272, %v441
        %v1289 = vor.u32 %v1273, %v441
        %v1290 = vor.u32 %v1274, %v442
        %v1291 = vor.u32 %v1275, %v442
        %v1292 = vor.u32 %v1276, %v443
        %v1293 = vor.u32 %v1277, %v443
        %v1294 = vor.u32 %v1278, %v444
        %v1295 = vor.u32 %v1279, %v444
        %vm1296 = vcmp.lt.s32.totalorder %v1280, %v1284
        %v1297 = vsel %vm1296, %v1280, %v1284
        %vm1298 = vcmp.lt.s32.totalorder %v1282, %v1286
        %v1299 = vsel %vm1298, %v1282, %v1286
        %vm1300 = vcmp.lt.s32.totalorder %v1297, %v1288
        %v1301 = vsel %vm1300, %v1297, %v1288
        %vm1302 = vcmp.lt.s32.totalorder %v1299, %v1290
        %v1303 = vsel %vm1302, %v1299, %v1290
        %vm1304 = vcmp.lt.s32.totalorder %v1301, %v1292
        %v1305 = vsel %vm1304, %v1301, %v1292
        %vm1306 = vcmp.lt.s32.totalorder %v1303, %v1294
        %v1307 = vsel %vm1306, %v1303, %v1294
        %vm1308 = vcmp.lt.s32.totalorder %v1305, %v1307
        %v1309 = vsel %vm1308, %v1305, %v1307
        %v1310 = vrot.slane %v1309, 4
        %vm1311 = vcmp.lt.s32.totalorder %v1309, %v1310
        %v1312 = vsel %vm1311, %v1309, %v1310
        %v1313 = vrot.slane %v1312, 2
        %vm1314 = vcmp.lt.s32.totalorder %v1312, %v1313
        %v1315 = vsel %vm1314, %v1312, %v1313
        %v1316 = vrot.slane %v1315, 1
        %vm1317 = vcmp.lt.s32.totalorder %v1315, %v1316
        %v1318 = vsel %vm1317, %v1315, %v1316
        %vm1319 = vcmp.lt.s32.totalorder %v1281, %v1285
        %v1320 = vsel %vm1319, %v1281, %v1285
        %vm1321 = vcmp.lt.s32.totalorder %v1283, %v1287
        %v1322 = vsel %vm1321, %v1283, %v1287
        %vm1323 = vcmp.lt.s32.totalorder %v1320, %v1289
        %v1324 = vsel %vm1323, %v1320, %v1289
        %vm1325 = vcmp.lt.s32.totalorder %v1322, %v1291
        %v1326 = vsel %vm1325, %v1322, %v1291
        %vm1327 = vcmp.lt.s32.totalorder %v1324, %v1293
        %v1328 = vsel %vm1327, %v1324, %v1293
        %vm1329 = vcmp.lt.s32.totalorder %v1326, %v1295
        %v1330 = vsel %vm1329, %v1326, %v1295
        %vm1331 = vcmp.lt.s32.totalorder %v1328, %v1330
        %v1332 = vsel %vm1331, %v1328, %v1330
        %v1333 = vrot.slane %v1332, 4
        %vm1334 = vcmp.lt.s32.totalorder %v1332, %v1333
        %v1335 = vsel %vm1334, %v1332, %v1333
        %v1336 = vrot.slane %v1335, 2
        %vm1337 = vcmp.lt.s32.totalorder %v1335, %v1336
        %v1338 = vsel %vm1337, %v1335, %v1336
        %v1339 = vrot.slane %v1338, 1
        %vm1340 = vcmp.lt.s32.totalorder %v1338, %v1339
        %v1341 = vsel %vm1340, %v1338, %v1339
        %v1342 = vand.u32 %v1318, 63
        %v1343 = vand.u32 %v1341, 63
        %vm1344 = vcmp.eq.s32.totalorder %v437, %v1342
        %vm1345 = vcmp.eq.s32.totalorder %v437, %v1343
        %vm1346 = vcmp.eq.s32.totalorder %v438, %v1342
        %vm1347 = vcmp.eq.s32.totalorder %v438, %v1343
        %vm1348 = vcmp.eq.s32.totalorder %v439, %v1342
        %vm1349 = vcmp.eq.s32.totalorder %v439, %v1343
        %vm1350 = vcmp.eq.s32.totalorder %v440, %v1342
        %vm1351 = vcmp.eq.s32.totalorder %v440, %v1343
        %vm1352 = vcmp.eq.s32.totalorder %v441, %v1342
        %vm1353 = vcmp.eq.s32.totalorder %v441, %v1343
        %vm1354 = vcmp.eq.s32.totalorder %v442, %v1342
        %vm1355 = vcmp.eq.s32.totalorder %v442, %v1343
        %vm1356 = vcmp.eq.s32.totalorder %v443, %v1342
        %vm1357 = vcmp.eq.s32.totalorder %v443, %v1343
        %vm1358 = vcmp.eq.s32.totalorder %v444, %v1342
        %vm1359 = vcmp.eq.s32.totalorder %v444, %v1343
        %v1360 = vsel %vm1344, 1, 0
        %v1361 = vsel %vm1345, 1, 0
        %v1362 = vsel %vm1346, 1, 0
        %v1363 = vsel %vm1347, 1, 0
        %v1364 = vsel %vm1348, 1, 0
        %v1365 = vsel %vm1349, 1, 0
        %v1366 = vsel %vm1350, 1, 0
        %v1367 = vsel %vm1351, 1, 0
        %v1368 = vsel %vm1352, 1, 0
        %v1369 = vsel %vm1353, 1, 0
        %v1370 = vsel %vm1354, 1, 0
        %v1371 = vsel %vm1355, 1, 0
        %v1372 = vsel %vm1356, 1, 0
        %v1373 = vsel %vm1357, 1, 0
        %v1374 = vsel %vm1358, 1, 0
        %v1375 = vsel %vm1359, 1, 0
        %v1376 = vcvt.s32.f32 %v1360
        %v1377 = vcvt.s32.f32 %v1361
        %v1378 = vcvt.s32.f32 %v1362
        %v1379 = vcvt.s32.f32 %v1363
        %v1380 = vcvt.s32.f32 %v1364
        %v1381 = vcvt.s32.f32 %v1365
        %v1382 = vcvt.s32.f32 %v1366
        %v1383 = vcvt.s32.f32 %v1367
        %v1384 = vcvt.s32.f32 %v1368
        %v1385 = vcvt.s32.f32 %v1369
        %v1386 = vcvt.s32.f32 %v1370
        %v1387 = vcvt.s32.f32 %v1371
        %v1388 = vcvt.s32.f32 %v1372
        %v1389 = vcvt.s32.f32 %v1373
        %v1390 = vcvt.s32.f32 %v1374
        %v1391 = vcvt.s32.f32 %v1375
        %1392 = vxpose.xlu0.b32.start [1/16] %v990, 128
        %1393 = vxpose.xlu0.b32.cont [2/16] %v991, 128
        %1394 = vxpose.xlu0.b32.cont [3/16] %v992, 128
        %1395 = vxpose.xlu0.b32.cont [4/16] %v993, 128
        %1396 = vxpose.xlu0.b32.cont [5/16] %v994, 128
        %1397 = vxpose.xlu0.b32.cont [6/16] %v995, 128
        %1398 = vxpose.xlu0.b32.cont [7/16] %v996, 128
        %1399 = vxpose.xlu0.b32.cont [8/16] %v997, 128
        %1400 = vxpose.xlu0.b32.cont [9/16] 0.0, 128
        %1401 = vxpose.xlu0.b32.cont [10/16] 0.0, 128
        %1402 = vxpose.xlu0.b32.cont [11/16] 0.0, 128
        %1403 = vxpose.xlu0.b32.cont [12/16] 0.0, 128
        %1404 = vxpose.xlu0.b32.cont [13/16] 0.0, 128
        %1405 = vxpose.xlu0.b32.cont [14/16] 0.0, 128
        %1406 = vxpose.xlu0.b32.cont [15/16] 0.0, 128
        %1407 = vxpose.xlu0.b32.end [16/16] 0.0, 128
        %v1408 = vpop.trf.xlu0
        %v1409 = vpop.trf.xlu0
        %v1410 = vpop.trf.xlu0
        %v1411 = vpop.trf.xlu0
        %v1412 = vpop.trf.xlu0
        %v1413 = vpop.trf.xlu0
        %v1414 = vpop.trf.xlu0
        %v1415 = vpop.trf.xlu0
        %v1416 = vpop.trf.xlu0
        %v1417 = vpop.trf.xlu0
        %v1418 = vpop.trf.xlu0
        %v1419 = vpop.trf.xlu0
        %v1420 = vpop.trf.xlu0
        %v1421 = vpop.trf.xlu0
        %v1422 = vpop.trf.xlu0
        %v1423 = vpop.trf.xlu0
        %v1425 = vsel %vm879, %v1408, 0
        %v1428 = vsel %vm879, %v1409, 0
        %v1431 = vsel %vm879, %v1410, 0
        %v1434 = vsel %vm879, %v1411, 0
        %1436 = vmatprep.subr.mxu0 %v1377
        %1437 = vmatpush1.msra.mxu0 %v1376
        %1438 = vmatprep.subr.mxu0 %v1379
        %1439 = vmatpush1.msra.mxu0 %v1378
        %1440 = vmatprep.subr.mxu0 %v1381
        %1441 = vmatpush1.msra.mxu0 %v1380
        %1442 = vmatprep.subr.mxu0 %v1383
        %1443 = vmatpush1.msra.mxu0 %v1382
        %1444 = vmatprep.subr.mxu0 %v1385
        %1445 = vmatpush1.msra.mxu0 %v1384
        %1446 = vmatprep.subr.mxu0 %v1387
        %1447 = vmatpush1.msra.mxu0 %v1386
        %1448 = vmatprep.subr.mxu0 %v1389
        %1449 = vmatpush1.msra.mxu0 %v1388
        %1450 = vmatprep.subr.mxu0 %v1391
        %1451 = vmatpush1.msra.mxu0 %v1390
        %1452 = vmatprep.subr.mxu0 0.0
        %1453 = vmatpush1.msra.mxu0 0.0
        %1454 = vmatprep.subr.mxu0 0.0
        %1455 = vmatpush1.msra.mxu0 0.0
        %1456 = vmatprep.subr.mxu0 0.0
        %1457 = vmatpush1.msra.mxu0 0.0
        %1458 = vmatprep.subr.mxu0 0.0
        %1459 = vmatpush1.msra.mxu0 0.0
        %1460 = vmatprep.subr.mxu0 0.0
        %1461 = vmatpush1.msra.mxu0 0.0
        %1462 = vmatprep.subr.mxu0 0.0
        %1463 = vmatpush1.msra.mxu0 0.0
        %1464 = vmatprep.subr.mxu0 0.0
        %1465 = vmatpush1.msra.mxu0 0.0
        %1466 = vmatprep.subr.mxu0 0.0
        %1467 = vmatpush1.msra.mxu0 0.0
        %1468 = vmatprep.subr.mxu0 0.0
        %1469 = vmatpush1.msra.mxu0 0.0
        %1470 = vmatprep.subr.mxu0 0.0
        %1471 = vmatpush1.msra.mxu0 0.0
        %1472 = vmatprep.subr.mxu0 0.0
        %1473 = vmatpush1.msra.mxu0 0.0
        %1474 = vmatprep.subr.mxu0 0.0
        %1475 = vmatpush1.msra.mxu0 0.0
        %1476 = vmatprep.subr.mxu0 0.0
        %1477 = vmatpush1.msra.mxu0 0.0
        %1478 = vmatprep.subr.mxu0 0.0
        %1479 = vmatpush1.msra.mxu0 0.0
        %1480 = vmatprep.subr.mxu0 0.0
        %1481 = vmatpush1.msra.mxu0 0.0
        %1482 = vmatprep.subr.mxu0 0.0
        %1483 = vmatpush1.msra.mxu0 0.0
        %1484 = vmatprep.subr.mxu0 0.0
        %1485 = vmatpush1.msra.mxu0 0.0
        %1486 = vmatprep.subr.mxu0 0.0
        %1487 = vmatpush1.msra.mxu0 0.0
        %1488 = vmatprep.subr.mxu0 0.0
        %1489 = vmatpush1.msra.mxu0 0.0
        %1490 = vmatprep.subr.mxu0 0.0
        %1491 = vmatpush1.msra.mxu0 0.0
        %1492 = vmatprep.subr.mxu0 0.0
        %1493 = vmatpush1.msra.mxu0 0.0
        %1494 = vmatprep.subr.mxu0 0.0
        %1495 = vmatpush1.msra.mxu0 0.0
        %1496 = vmatprep.subr.mxu0 0.0
        %1497 = vmatpush1.msra.mxu0 0.0
        %1498 = vmatprep.subr.mxu0 0.0
        %1499 = vmatpush1.msra.mxu0 0.0
        %1500 = vmatprep.mubr.f32.mxu0 0.0
        %1501 = vmatmul.mubr.f32.gmra.mrb[0].mxu0 %v1425
        %v1502 = vpop.f32.mrb[0].mxu0
        %v1503 = vadd.f32 0.0, %v1502
        %v1504 = vpop.f32.mrb[0].mxu0
        %v1505 = vadd.f32 0.0, %v1504
        %1506 = vmatprep.mubr.f32.mxu0 0.0
        %1507 = vmatmul.mubr.f32.gmra.mrb[0].mxu0 %v1428
        %v1508 = vpop.f32.mrb[0].mxu0
        %v1509 = vadd.f32 0.0, %v1508
        %v1510 = vpop.f32.mrb[0].mxu0
        %v1511 = vadd.f32 0.0, %v1510
        %1512 = vmatprep.mubr.f32.mxu0 0.0
        %1513 = vmatmul.mubr.f32.gmra.mrb[0].mxu0 %v1431
        %v1514 = vpop.f32.mrb[0].mxu0
        %v1515 = vadd.f32 0.0, %v1514
        %v1516 = vpop.f32.mrb[0].mxu0
        %v1517 = vadd.f32 0.0, %v1516
        %1518 = vmatprep.mubr.f32.mxu0 0.0
        %1519 = vmatmul.mubr.f32.gmra.mrb[0].mxu0 %v1434
        %v1520 = vpop.f32.mrb[0].mxu0
        %v1521 = vadd.f32 0.0, %v1520
        %v1522 = vpop.f32.mrb[0].mxu0
        %v1523 = vadd.f32 0.0, %v1522
        %1524 = vdwg.mxu0
        %v1525 = vsub.f32 %v981, %v1503
        %v1526 = vsub.f32 %v982, %v1505
        %v1527 = vsub.f32 %v983, %v1509
        %v1528 = vsub.f32 %v984, %v1511
        %v1529 = vsub.f32 %v985, %v1515
        %v1530 = vsub.f32 %v986, %v1517
        %v1531 = vsub.f32 %v987, %v1521
        %v1532 = vsub.f32 %v988, %v1523
        %s1533 = scalar_lea.vmem %s3, 128
        %v1534 = vld [vmem:[%s1533] sm:$0xff]
        %v1535 = vld [vmem:[%s1533 + $0x8] sm:$0xff]
        %v1536 = vld [vmem:[%s1533 + $0x10] sm:$0xff]
        %v1537 = vld [vmem:[%s1533 + $0x18] sm:$0xff]
        %v1538 = vld [vmem:[%s1533 + $0x20] sm:$0xff]
        %v1539 = vld [vmem:[%s1533 + $0x28] sm:$0xff]
        %v1540 = vld [vmem:[%s1533 + $0x30] sm:$0xff]
        %v1541 = vld [vmem:[%s1533 + $0x38] sm:$0xff]
        %v1543 = vsel %vm453, %v1534, 0
        %v1546 = vsel %vm453, %v1535, 0
        %v1549 = vsel %vm453, %v1536, 0
        %v1552 = vsel %vm453, %v1537, 0
        %v1555 = vsel %vm453, %v1538, 0
        %v1558 = vsel %vm453, %v1539, 0
        %v1561 = vsel %vm453, %v1540, 0
        %v1564 = vsel %vm453, %v1541, 0
        %1566 = vmatprep.subr.mxu0 %v1526
        %1567 = vmatpush1.msra.mxu0 %v1525
        %1568 = vmatprep.subr.mxu0 %v1528
        %1569 = vmatpush1.msra.mxu0 %v1527
        %1570 = vmatprep.subr.mxu0 %v1530
        %1571 = vmatpush1.msra.mxu0 %v1529
        %1572 = vmatprep.subr.mxu0 %v1532
        %1573 = vmatpush1.msra.mxu0 %v1531
        %1574 = vmatprep.subr.mxu0 0.0
        %1575 = vmatpush1.msra.mxu0 0.0
        %1576 = vmatprep.subr.mxu0 0.0
        %1577 = vmatpush1.msra.mxu0 0.0
        %1578 = vmatprep.subr.mxu0 0.0
        %1579 = vmatpush1.msra.mxu0 0.0
        %1580 = vmatprep.subr.mxu0 0.0
        %1581 = vmatpush1.msra.mxu0 0.0
        %1582 = vmatprep.subr.mxu0 0.0
        %1583 = vmatpush1.msra.mxu0 0.0
        %1584 = vmatprep.subr.mxu0 0.0
        %1585 = vmatpush1.msra.mxu0 0.0
        %1586 = vmatprep.subr.mxu0 0.0
        %1587 = vmatpush1.msra.mxu0 0.0
        %1588 = vmatprep.subr.mxu0 0.0
        %1589 = vmatpush1.msra.mxu0 0.0
        %1590 = vmatprep.subr.mxu0 0.0
        %1591 = vmatpush1.msra.mxu0 0.0
        %1592 = vmatprep.subr.mxu0 0.0
        %1593 = vmatpush1.msra.mxu0 0.0
        %1594 = vmatprep.subr.mxu0 0.0
        %1595 = vmatpush1.msra.mxu0 0.0
        %1596 = vmatprep.subr.mxu0 0.0
        %1597 = vmatpush1.msra.mxu0 0.0
        %1598 = vmatprep.subr.mxu0 0.0
        %1599 = vmatpush1.msra.mxu0 0.0
        %1600 = vmatprep.subr.mxu0 0.0
        %1601 = vmatpush1.msra.mxu0 0.0
        %1602 = vmatprep.subr.mxu0 0.0
        %1603 = vmatpush1.msra.mxu0 0.0
        %1604 = vmatprep.subr.mxu0 0.0
        %1605 = vmatpush1.msra.mxu0 0.0
        %1606 = vmatprep.subr.mxu0 0.0
        %1607 = vmatpush1.msra.mxu0 0.0
        %1608 = vmatprep.subr.mxu0 0.0
        %1609 = vmatpush1.msra.mxu0 0.0
        %1610 = vmatprep.subr.mxu0 0.0
        %1611 = vmatpush1.msra.mxu0 0.0
        %1612 = vmatprep.subr.mxu0 0.0
        %1613 = vmatpush1.msra.mxu0 0.0
        %1614 = vmatprep.subr.mxu0 0.0
        %1615 = vmatpush1.msra.mxu0 0.0
        %1616 = vmatprep.subr.mxu0 0.0
        %1617 = vmatpush1.msra.mxu0 0.0
        %1618 = vmatprep.subr.mxu0 0.0
        %1619 = vmatpush1.msra.mxu0 0.0
        %1620 = vmatprep.subr.mxu0 0.0
        %1621 = vmatpush1.msra.mxu0 0.0
        %1622 = vmatprep.subr.mxu0 0.0
        %1623 = vmatpush1.msra.mxu0 0.0
        %1624 = vmatprep.subr.mxu0 0.0
        %1625 = vmatpush1.msra.mxu0 0.0
        %1626 = vmatprep.subr.mxu0 0.0
        %1627 = vmatpush1.msra.mxu0 0.0
        %1628 = vmatprep.subr.mxu0 0.0
        %1629 = vmatpush1.msra.mxu0 0.0
        %1630 = vmatprep.mubr.f32.mxu0 0.0
        %1631 = vmatmul.mubr.f32.gmra.mrb[0].mxu0 %v1543
        %v1632 = vpop.f32.mrb[0].mxu0
        %v1633 = vadd.f32 0.0, %v1632
        %v1634 = vpop.f32.mrb[0].mxu0
        %v1635 = vadd.f32 0.0, %v1634
        %1636 = vmatprep.mubr.f32.mxu0 0.0
        %1637 = vmatmul.mubr.f32.gmra.mrb[0].mxu0 %v1546
        %v1638 = vpop.f32.mrb[0].mxu0
        %v1639 = vadd.f32 0.0, %v1638
        %v1640 = vpop.f32.mrb[0].mxu0
        %v1641 = vadd.f32 0.0, %v1640
        %1642 = vmatprep.mubr.f32.mxu0 0.0
        %1643 = vmatmul.mubr.f32.gmra.mrb[0].mxu0 %v1549
        %v1644 = vpop.f32.mrb[0].mxu0
        %v1645 = vadd.f32 0.0, %v1644
        %v1646 = vpop.f32.mrb[0].mxu0
        %v1647 = vadd.f32 0.0, %v1646
        %1648 = vmatprep.mubr.f32.mxu0 0.0
        %1649 = vmatmul.mubr.f32.gmra.mrb[0].mxu0 %v1552
        %v1650 = vpop.f32.mrb[0].mxu0
        %v1651 = vadd.f32 0.0, %v1650
        %v1652 = vpop.f32.mrb[0].mxu0
        %v1653 = vadd.f32 0.0, %v1652
        %1654 = vmatprep.mubr.f32.mxu0 0.0
        %1655 = vmatmul.mubr.f32.gmra.mrb[0].mxu0 %v1555
        %v1656 = vpop.f32.mrb[0].mxu0
        %v1657 = vadd.f32 0.0, %v1656
        %v1658 = vpop.f32.mrb[0].mxu0
        %v1659 = vadd.f32 0.0, %v1658
        %1660 = vmatprep.mubr.f32.mxu0 0.0
        %1661 = vmatmul.mubr.f32.gmra.mrb[0].mxu0 %v1558
        %v1662 = vpop.f32.mrb[0].mxu0
        %v1663 = vadd.f32 0.0, %v1662
        %v1664 = vpop.f32.mrb[0].mxu0
        %v1665 = vadd.f32 0.0, %v1664
        %1666 = vmatprep.mubr.f32.mxu0 0.0
        %1667 = vmatmul.mubr.f32.gmra.mrb[0].mxu0 %v1561
        %v1668 = vpop.f32.mrb[0].mxu0
        %v1669 = vadd.f32 0.0, %v1668
        %v1670 = vpop.f32.mrb[0].mxu0
        %v1671 = vadd.f32 0.0, %v1670
        %1672 = vmatprep.mubr.f32.mxu0 0.0
        %1673 = vmatmul.mubr.f32.gmra.mrb[0].mxu0 %v1564
        %v1674 = vpop.f32.mrb[0].mxu0
        %v1675 = vadd.f32 0.0, %v1674
        %v1676 = vpop.f32.mrb[0].mxu0
        %v1677 = vadd.f32 0.0, %v1676
        %1678 = vdwg.mxu0
        %s1679 = scalar_lea.vmem %s4, 128
        %v1680 = vld [vmem:[%s1679] sm:$0xff]
        %v1681 = vld [vmem:[%s1679 + $0x8] sm:$0xff]
        %v1682 = vld [vmem:[%s1679 + $0x10] sm:$0xff]
        %v1683 = vld [vmem:[%s1679 + $0x18] sm:$0xff]
        %v1684 = vld [vmem:[%s1679 + $0x20] sm:$0xff]
        %v1685 = vld [vmem:[%s1679 + $0x28] sm:$0xff]
        %v1686 = vld [vmem:[%s1679 + $0x30] sm:$0xff]
        %v1687 = vld [vmem:[%s1679 + $0x38] sm:$0xff]
        %1689 = vset.pattern.permute.xlu0 0
        %1690 = vperm.xlu0 %1689, %v1680
        %v1691 = vpop.permute.xlu0 %1690
        %1694 = vset.pattern.permute.xlu0 0
        %1695 = vperm.xlu0 %1694, %v1681
        %v1696 = vpop.permute.xlu0 %1695
        %1699 = vset.pattern.permute.xlu0 0
        %1700 = vperm.xlu0 %1699, %v1682
        %v1701 = vpop.permute.xlu0 %1700
        %1704 = vset.pattern.permute.xlu0 0
        %1705 = vperm.xlu0 %1704, %v1683
        %v1706 = vpop.permute.xlu0 %1705
        %1709 = vset.pattern.permute.xlu0 0
        %1710 = vperm.xlu0 %1709, %v1684
        %v1711 = vpop.permute.xlu0 %1710
        %1714 = vset.pattern.permute.xlu0 0
        %1715 = vperm.xlu0 %1714, %v1685
        %v1716 = vpop.permute.xlu0 %1715
        %1719 = vset.pattern.permute.xlu0 0
        %1720 = vperm.xlu0 %1719, %v1686
        %v1721 = vpop.permute.xlu0 %1720
        %1724 = vset.pattern.permute.xlu0 0
        %1725 = vperm.xlu0 %1724, %v1687
        %v1726 = vpop.permute.xlu0 %1725
        %v1728 = vsub.f32 %v1691, %v1633
        %v1729 = vsub.f32 %v1691, %v1635
        %v1730 = vsub.f32 %v1696, %v1639
        %v1731 = vsub.f32 %v1696, %v1641
        %v1732 = vsub.f32 %v1701, %v1645
        %v1733 = vsub.f32 %v1701, %v1647
        %v1734 = vsub.f32 %v1706, %v1651
        %v1735 = vsub.f32 %v1706, %v1653
        %v1736 = vsub.f32 %v1711, %v1657
        %v1737 = vsub.f32 %v1711, %v1659
        %v1738 = vsub.f32 %v1716, %v1663
        %v1739 = vsub.f32 %v1716, %v1665
        %v1740 = vsub.f32 %v1721, %v1669
        %v1741 = vsub.f32 %v1721, %v1671
        %v1742 = vsub.f32 %v1726, %v1675
        %v1743 = vsub.f32 %v1726, %v1677
        %v1760 = vshra.s32 %v1728, 31
        %v1761 = vshra.s32 %v1729, 31
        %v1762 = vshra.s32 %v1730, 31
        %v1763 = vshra.s32 %v1731, 31
        %v1764 = vshra.s32 %v1732, 31
        %v1765 = vshra.s32 %v1733, 31
        %v1766 = vshra.s32 %v1734, 31
        %v1767 = vshra.s32 %v1735, 31
        %v1768 = vshra.s32 %v1736, 31
        %v1769 = vshra.s32 %v1737, 31
        %v1770 = vshra.s32 %v1738, 31
        %v1771 = vshra.s32 %v1739, 31
        %v1772 = vshra.s32 %v1740, 31
        %v1773 = vshra.s32 %v1741, 31
        %v1774 = vshra.s32 %v1742, 31
        %v1775 = vshra.s32 %v1743, 31
        %v1776 = vand.u32 %v1760, 2147483647
        %v1777 = vand.u32 %v1761, 2147483647
        %v1778 = vand.u32 %v1762, 2147483647
        %v1779 = vand.u32 %v1763, 2147483647
        %v1780 = vand.u32 %v1764, 2147483647
        %v1781 = vand.u32 %v1765, 2147483647
        %v1782 = vand.u32 %v1766, 2147483647
        %v1783 = vand.u32 %v1767, 2147483647
        %v1784 = vand.u32 %v1768, 2147483647
        %v1785 = vand.u32 %v1769, 2147483647
        %v1786 = vand.u32 %v1770, 2147483647
        %v1787 = vand.u32 %v1771, 2147483647
        %v1788 = vand.u32 %v1772, 2147483647
        %v1789 = vand.u32 %v1773, 2147483647
        %v1790 = vand.u32 %v1774, 2147483647
        %v1791 = vand.u32 %v1775, 2147483647
        %v1792 = vxor.u32 %v1728, %v1776
        %v1793 = vxor.u32 %v1729, %v1777
        %v1794 = vxor.u32 %v1730, %v1778
        %v1795 = vxor.u32 %v1731, %v1779
        %v1796 = vxor.u32 %v1732, %v1780
        %v1797 = vxor.u32 %v1733, %v1781
        %v1798 = vxor.u32 %v1734, %v1782
        %v1799 = vxor.u32 %v1735, %v1783
        %v1800 = vxor.u32 %v1736, %v1784
        %v1801 = vxor.u32 %v1737, %v1785
        %v1802 = vxor.u32 %v1738, %v1786
        %v1803 = vxor.u32 %v1739, %v1787
        %v1804 = vxor.u32 %v1740, %v1788
        %v1805 = vxor.u32 %v1741, %v1789
        %v1806 = vxor.u32 %v1742, %v1790
        %v1807 = vxor.u32 %v1743, %v1791
        %v1808 = vand.u32 %v1792, 4294967232
        %v1809 = vand.u32 %v1793, 4294967232
        %v1810 = vand.u32 %v1794, 4294967232
        %v1811 = vand.u32 %v1795, 4294967232
        %v1812 = vand.u32 %v1796, 4294967232
        %v1813 = vand.u32 %v1797, 4294967232
        %v1814 = vand.u32 %v1798, 4294967232
        %v1815 = vand.u32 %v1799, 4294967232
        %v1816 = vand.u32 %v1800, 4294967232
        %v1817 = vand.u32 %v1801, 4294967232
        %v1818 = vand.u32 %v1802, 4294967232
        %v1819 = vand.u32 %v1803, 4294967232
        %v1820 = vand.u32 %v1804, 4294967232
        %v1821 = vand.u32 %v1805, 4294967232
        %v1822 = vand.u32 %v1806, 4294967232
        %v1823 = vand.u32 %v1807, 4294967232
        %v1824 = vor.u32 %v1808, %v437
        %v1825 = vor.u32 %v1809, %v437
        %v1826 = vor.u32 %v1810, %v438
        %v1827 = vor.u32 %v1811, %v438
        %v1828 = vor.u32 %v1812, %v439
        %v1829 = vor.u32 %v1813, %v439
        %v1830 = vor.u32 %v1814, %v440
        %v1831 = vor.u32 %v1815, %v440
        %v1832 = vor.u32 %v1816, %v441
        %v1833 = vor.u32 %v1817, %v441
        %v1834 = vor.u32 %v1818, %v442
        %v1835 = vor.u32 %v1819, %v442
        %v1836 = vor.u32 %v1820, %v443
        %v1837 = vor.u32 %v1821, %v443
        %v1838 = vor.u32 %v1822, %v444
        %v1839 = vor.u32 %v1823, %v444
        %vm1840 = vcmp.lt.s32.totalorder %v1824, %v1828
        %v1841 = vsel %vm1840, %v1824, %v1828
        %vm1842 = vcmp.lt.s32.totalorder %v1826, %v1830
        %v1843 = vsel %vm1842, %v1826, %v1830
        %vm1844 = vcmp.lt.s32.totalorder %v1841, %v1832
        %v1845 = vsel %vm1844, %v1841, %v1832
        %vm1846 = vcmp.lt.s32.totalorder %v1843, %v1834
        %v1847 = vsel %vm1846, %v1843, %v1834
        %vm1848 = vcmp.lt.s32.totalorder %v1845, %v1836
        %v1849 = vsel %vm1848, %v1845, %v1836
        %vm1850 = vcmp.lt.s32.totalorder %v1847, %v1838
        %v1851 = vsel %vm1850, %v1847, %v1838
        %vm1852 = vcmp.lt.s32.totalorder %v1849, %v1851
        %v1853 = vsel %vm1852, %v1849, %v1851
        %v1854 = vrot.slane %v1853, 4
        %vm1855 = vcmp.lt.s32.totalorder %v1853, %v1854
        %v1856 = vsel %vm1855, %v1853, %v1854
        %v1857 = vrot.slane %v1856, 2
        %vm1858 = vcmp.lt.s32.totalorder %v1856, %v1857
        %v1859 = vsel %vm1858, %v1856, %v1857
        %v1860 = vrot.slane %v1859, 1
        %vm1861 = vcmp.lt.s32.totalorder %v1859, %v1860
        %v1862 = vsel %vm1861, %v1859, %v1860
        %vm1863 = vcmp.lt.s32.totalorder %v1825, %v1829
        %v1864 = vsel %vm1863, %v1825, %v1829
        %vm1865 = vcmp.lt.s32.totalorder %v1827, %v1831
        %v1866 = vsel %vm1865, %v1827, %v1831
        %vm1867 = vcmp.lt.s32.totalorder %v1864, %v1833
        %v1868 = vsel %vm1867, %v1864, %v1833
        %vm1869 = vcmp.lt.s32.totalorder %v1866, %v1835
        %v1870 = vsel %vm1869, %v1866, %v1835
        %vm1871 = vcmp.lt.s32.totalorder %v1868, %v1837
        %v1872 = vsel %vm1871, %v1868, %v1837
        %vm1873 = vcmp.lt.s32.totalorder %v1870, %v1839
        %v1874 = vsel %vm1873, %v1870, %v1839
        %vm1875 = vcmp.lt.s32.totalorder %v1872, %v1874
        %v1876 = vsel %vm1875, %v1872, %v1874
        %v1877 = vrot.slane %v1876, 4
        %vm1878 = vcmp.lt.s32.totalorder %v1876, %v1877
        %v1879 = vsel %vm1878, %v1876, %v1877
        %v1880 = vrot.slane %v1879, 2
        %vm1881 = vcmp.lt.s32.totalorder %v1879, %v1880
        %v1882 = vsel %vm1881, %v1879, %v1880
        %v1883 = vrot.slane %v1882, 1
        %vm1884 = vcmp.lt.s32.totalorder %v1882, %v1883
        %v1885 = vsel %vm1884, %v1882, %v1883
        %v1886 = vand.u32 %v1862, 63
        %v1887 = vand.u32 %v1885, 63
        %vm1888 = vcmp.eq.s32.totalorder %v437, %v1886
        %vm1889 = vcmp.eq.s32.totalorder %v437, %v1887
        %vm1890 = vcmp.eq.s32.totalorder %v438, %v1886
        %vm1891 = vcmp.eq.s32.totalorder %v438, %v1887
        %vm1892 = vcmp.eq.s32.totalorder %v439, %v1886
        %vm1893 = vcmp.eq.s32.totalorder %v439, %v1887
        %vm1894 = vcmp.eq.s32.totalorder %v440, %v1886
        %vm1895 = vcmp.eq.s32.totalorder %v440, %v1887
        %vm1896 = vcmp.eq.s32.totalorder %v441, %v1886
        %vm1897 = vcmp.eq.s32.totalorder %v441, %v1887
        %vm1898 = vcmp.eq.s32.totalorder %v442, %v1886
        %vm1899 = vcmp.eq.s32.totalorder %v442, %v1887
        %vm1900 = vcmp.eq.s32.totalorder %v443, %v1886
        %vm1901 = vcmp.eq.s32.totalorder %v443, %v1887
        %vm1902 = vcmp.eq.s32.totalorder %v444, %v1886
        %vm1903 = vcmp.eq.s32.totalorder %v444, %v1887
        %v1904 = vsel %vm1888, 1, 0
        %v1905 = vsel %vm1889, 1, 0
        %v1906 = vsel %vm1890, 1, 0
        %v1907 = vsel %vm1891, 1, 0
        %v1908 = vsel %vm1892, 1, 0
        %v1909 = vsel %vm1893, 1, 0
        %v1910 = vsel %vm1894, 1, 0
        %v1911 = vsel %vm1895, 1, 0
        %v1912 = vsel %vm1896, 1, 0
        %v1913 = vsel %vm1897, 1, 0
        %v1914 = vsel %vm1898, 1, 0
        %v1915 = vsel %vm1899, 1, 0
        %v1916 = vsel %vm1900, 1, 0
        %v1917 = vsel %vm1901, 1, 0
        %v1918 = vsel %vm1902, 1, 0
        %v1919 = vsel %vm1903, 1, 0
        %v1920 = vcvt.s32.f32 %v1904
        %v1921 = vcvt.s32.f32 %v1905
        %v1922 = vcvt.s32.f32 %v1906
        %v1923 = vcvt.s32.f32 %v1907
        %v1924 = vcvt.s32.f32 %v1908
        %v1925 = vcvt.s32.f32 %v1909
        %v1926 = vcvt.s32.f32 %v1910
        %v1927 = vcvt.s32.f32 %v1911
        %v1928 = vcvt.s32.f32 %v1912
        %v1929 = vcvt.s32.f32 %v1913
        %v1930 = vcvt.s32.f32 %v1914
        %v1931 = vcvt.s32.f32 %v1915
        %v1932 = vcvt.s32.f32 %v1916
        %v1933 = vcvt.s32.f32 %v1917
        %v1934 = vcvt.s32.f32 %v1918
        %v1935 = vcvt.s32.f32 %v1919
        %1936 = vxpose.xlu0.b32.start [1/16] %v1534, 128
        %1937 = vxpose.xlu0.b32.cont [2/16] %v1535, 128
        %1938 = vxpose.xlu0.b32.cont [3/16] %v1536, 128
        %1939 = vxpose.xlu0.b32.cont [4/16] %v1537, 128
        %1940 = vxpose.xlu0.b32.cont [5/16] %v1538, 128
        %1941 = vxpose.xlu0.b32.cont [6/16] %v1539, 128
        %1942 = vxpose.xlu0.b32.cont [7/16] %v1540, 128
        %1943 = vxpose.xlu0.b32.cont [8/16] %v1541, 128
        %1944 = vxpose.xlu0.b32.cont [9/16] 0.0, 128
        %1945 = vxpose.xlu0.b32.cont [10/16] 0.0, 128
        %1946 = vxpose.xlu0.b32.cont [11/16] 0.0, 128
        %1947 = vxpose.xlu0.b32.cont [12/16] 0.0, 128
        %1948 = vxpose.xlu0.b32.cont [13/16] 0.0, 128
        %1949 = vxpose.xlu0.b32.cont [14/16] 0.0, 128
        %1950 = vxpose.xlu0.b32.cont [15/16] 0.0, 128
        %1951 = vxpose.xlu0.b32.end [16/16] 0.0, 128
        %v1952 = vpop.trf.xlu0
        %v1953 = vpop.trf.xlu0
        %v1954 = vpop.trf.xlu0
        %v1955 = vpop.trf.xlu0
        %v1956 = vpop.trf.xlu0
        %v1957 = vpop.trf.xlu0
        %v1958 = vpop.trf.xlu0
        %v1959 = vpop.trf.xlu0
        %v1960 = vpop.trf.xlu0
        %v1961 = vpop.trf.xlu0
        %v1962 = vpop.trf.xlu0
        %v1963 = vpop.trf.xlu0
        %v1964 = vpop.trf.xlu0
        %v1965 = vpop.trf.xlu0
        %v1966 = vpop.trf.xlu0
        %v1967 = vpop.trf.xlu0
        %v1969 = vsel %vm879, %v1952, 0
        %v1972 = vsel %vm879, %v1953, 0
        %v1975 = vsel %vm879, %v1954, 0
        %v1978 = vsel %vm879, %v1955, 0
        %1980 = vmatprep.subr.mxu0 %v1921
        %1981 = vmatpush1.msra.mxu0 %v1920
        %1982 = vmatprep.subr.mxu0 %v1923
        %1983 = vmatpush1.msra.mxu0 %v1922
        %1984 = vmatprep.subr.mxu0 %v1925
        %1985 = vmatpush1.msra.mxu0 %v1924
        %1986 = vmatprep.subr.mxu0 %v1927
        %1987 = vmatpush1.msra.mxu0 %v1926
        %1988 = vmatprep.subr.mxu0 %v1929
        %1989 = vmatpush1.msra.mxu0 %v1928
        %1990 = vmatprep.subr.mxu0 %v1931
        %1991 = vmatpush1.msra.mxu0 %v1930
        %1992 = vmatprep.subr.mxu0 %v1933
        %1993 = vmatpush1.msra.mxu0 %v1932
        %1994 = vmatprep.subr.mxu0 %v1935
        %1995 = vmatpush1.msra.mxu0 %v1934
        %1996 = vmatprep.subr.mxu0 0.0
        %1997 = vmatpush1.msra.mxu0 0.0
        %1998 = vmatprep.subr.mxu0 0.0
        %1999 = vmatpush1.msra.mxu0 0.0
        %2000 = vmatprep.subr.mxu0 0.0
        %2001 = vmatpush1.msra.mxu0 0.0
        %2002 = vmatprep.subr.mxu0 0.0
        %2003 = vmatpush1.msra.mxu0 0.0
        %2004 = vmatprep.subr.mxu0 0.0
        %2005 = vmatpush1.msra.mxu0 0.0
        %2006 = vmatprep.subr.mxu0 0.0
        %2007 = vmatpush1.msra.mxu0 0.0
        %2008 = vmatprep.subr.mxu0 0.0
        %2009 = vmatpush1.msra.mxu0 0.0
        %2010 = vmatprep.subr.mxu0 0.0
        %2011 = vmatpush1.msra.mxu0 0.0
        %2012 = vmatprep.subr.mxu0 0.0
        %2013 = vmatpush1.msra.mxu0 0.0
        %2014 = vmatprep.subr.mxu0 0.0
        %2015 = vmatpush1.msra.mxu0 0.0
        %2016 = vmatprep.subr.mxu0 0.0
        %2017 = vmatpush1.msra.mxu0 0.0
        %2018 = vmatprep.subr.mxu0 0.0
        %2019 = vmatpush1.msra.mxu0 0.0
        %2020 = vmatprep.subr.mxu0 0.0
        %2021 = vmatpush1.msra.mxu0 0.0
        %2022 = vmatprep.subr.mxu0 0.0
        %2023 = vmatpush1.msra.mxu0 0.0
        %2024 = vmatprep.subr.mxu0 0.0
        %2025 = vmatpush1.msra.mxu0 0.0
        %2026 = vmatprep.subr.mxu0 0.0
        %2027 = vmatpush1.msra.mxu0 0.0
        %2028 = vmatprep.subr.mxu0 0.0
        %2029 = vmatpush1.msra.mxu0 0.0
        %2030 = vmatprep.subr.mxu0 0.0
        %2031 = vmatpush1.msra.mxu0 0.0
        %2032 = vmatprep.subr.mxu0 0.0
        %2033 = vmatpush1.msra.mxu0 0.0
        %2034 = vmatprep.subr.mxu0 0.0
        %2035 = vmatpush1.msra.mxu0 0.0
        %2036 = vmatprep.subr.mxu0 0.0
        %2037 = vmatpush1.msra.mxu0 0.0
        %2038 = vmatprep.subr.mxu0 0.0
        %2039 = vmatpush1.msra.mxu0 0.0
        %2040 = vmatprep.subr.mxu0 0.0
        %2041 = vmatpush1.msra.mxu0 0.0
        %2042 = vmatprep.subr.mxu0 0.0
        %2043 = vmatpush1.msra.mxu0 0.0
        %2044 = vmatprep.mubr.f32.mxu0 0.0
        %2045 = vmatmul.mubr.f32.gmra.mrb[0].mxu0 %v1969
        %v2046 = vpop.f32.mrb[0].mxu0
        %v2047 = vadd.f32 0.0, %v2046
        %v2048 = vpop.f32.mrb[0].mxu0
        %v2049 = vadd.f32 0.0, %v2048
        %2050 = vmatprep.mubr.f32.mxu0 0.0
        %2051 = vmatmul.mubr.f32.gmra.mrb[0].mxu0 %v1972
        %v2052 = vpop.f32.mrb[0].mxu0
        %v2053 = vadd.f32 0.0, %v2052
        %v2054 = vpop.f32.mrb[0].mxu0
        %v2055 = vadd.f32 0.0, %v2054
        %2056 = vmatprep.mubr.f32.mxu0 0.0
        %2057 = vmatmul.mubr.f32.gmra.mrb[0].mxu0 %v1975
        %v2058 = vpop.f32.mrb[0].mxu0
        %v2059 = vadd.f32 0.0, %v2058
        %v2060 = vpop.f32.mrb[0].mxu0
        %v2061 = vadd.f32 0.0, %v2060
        %2062 = vmatprep.mubr.f32.mxu0 0.0
        %2063 = vmatmul.mubr.f32.gmra.mrb[0].mxu0 %v1978
        %v2064 = vpop.f32.mrb[0].mxu0
        %v2065 = vadd.f32 0.0, %v2064
        %v2066 = vpop.f32.mrb[0].mxu0
        %v2067 = vadd.f32 0.0, %v2066
        %2068 = vdwg.mxu0
        %v2069 = vsub.f32 %v1525, %v2047
        %v2070 = vsub.f32 %v1526, %v2049
        %v2071 = vsub.f32 %v1527, %v2053
        %v2072 = vsub.f32 %v1528, %v2055
        %v2073 = vsub.f32 %v1529, %v2059
        %v2074 = vsub.f32 %v1530, %v2061
        %v2075 = vsub.f32 %v1531, %v2065
        %v2076 = vsub.f32 %v1532, %v2067
        %v2077 = vsub.f32 %v428, %v2069
        %v2078 = vsub.f32 %v429, %v2070
        %v2079 = vsub.f32 %v430, %v2071
        %v2080 = vsub.f32 %v431, %v2072
        %v2081 = vsub.f32 %v432, %v2073
        %v2082 = vsub.f32 %v433, %v2074
        %v2083 = vsub.f32 %v434, %v2075
        %v2084 = vsub.f32 %v435, %v2076
        %2085 = vst [vmem:[%s242] sm:$0xff] %v2077
        %2086 = vst [vmem:[%s242 + $0x8] sm:$0xff] %v2078
        %2087 = vst [vmem:[%s242 + $0x10] sm:$0xff] %v2079
        %2088 = vst [vmem:[%s242 + $0x18] sm:$0xff] %v2080
        %2089 = vst [vmem:[%s242 + $0x20] sm:$0xff] %v2081
        %2090 = vst [vmem:[%s242 + $0x28] sm:$0xff] %v2082
        %2091 = vst [vmem:[%s242 + $0x30] sm:$0xff] %v2083
        %2092 = vst [vmem:[%s242 + $0x38] sm:$0xff] %v2084
        %s2093 = sand.u32 %s153, 1
        %s2094 = scalar_lea.sflag [#allocation3], %s2093
        %s2095 = sand.u32 %s153, 1
        %s2096 = smul.addr %s2095, 64
        %s2097 = scalar_lea.vmem [#allocation2], %s2096
        // Predicated region
        $region41: #{tpu_custom_call.1} parent=39 // pred_check
          %p2098 = pneg %p163
        $region42: #{tpu_custom_call.1} parent=39 // pred_check_branch
          %2100 = sbr.rel (%p2098) target = $region44
        $region43: #{tpu_custom_call.1} parent=39 // pred_region
          %s2101 = smul.u32 2, %s24
          %s2103 = ssub.s32 1024, 1024
          %2104 = vsyncadd %s2094, %s2103
          %s2105 = smul.addr %s23, 8
          %s2106 = sadd.s32 %s2101, %s2105
          %s2107 = smul.addr %s2106, 128
          %s2108 = scalar_lea.hbm %s5, %s2107
          %s2109 = sshll.u32 %s2097, 4
          %s2110 = int_to_ptr.vmem [resolvable:$true] %s2109
          %2115 = dma.vmem_to_hbm [thread:$0]  %s2110, 1024, %s2108, %s2094, 256, 256, 16
        $region44: #{tpu_custom_call.1} parent=39 // pred_fallthru
          _
      $region40: #{tpu_custom_call.1} parent=5 // pred_fallthru
        _
      %p2116 = scmp.le.s32.totalorder 2, %s14
      // Predicated region
      $region45: #{tpu_custom_call.1} parent=5 // pred_check
        %p2117 = pneg %p2116
      $region46: #{tpu_custom_call.1} parent=5 // pred_check_branch
        %2119 = sbr.rel (%p2117) target = $region48
      $region47: #{tpu_custom_call.1} parent=5 // pred_region
        %s2120 = ssub.s32 %s14, 2
        // Predicated region
        $region49: #{tpu_custom_call.1} parent=47 // pred_check
          %p2121 = pneg %p169
        $region50: #{tpu_custom_call.1} parent=47 // pred_check_branch
          %2123 = sbr.rel (%p2121) target = $region52
        $region51: #{tpu_custom_call.1} parent=47 // pred_region
          %s2124 = sand.u32 %s154, 1
          %s2125 = scalar_lea.sflag [#allocation3], %s2124
          %s2126 = sand.u32 %s154, 1
          %s2127 = smul.addr %s2126, 64
          %s2128 = scalar_lea.vmem [#allocation2], %s2127
          %2129 = dma.done %s2125, 1024
        $region52: #{tpu_custom_call.1} parent=47 // pred_fallthru
          _
      $region48: #{tpu_custom_call.1} parent=5 // pred_fallthru
        _
    $region6: #{tpu_custom_call.1} parent=1 // loop_footer
      %s18 = sadd.s32 1, %s14
    $region7: #{tpu_custom_call.1} parent=1 // loop_footer_branch
      %13 = sbr.rel target = $region3
    $region8: #{tpu_custom_call.1} parent=1 // loop_exit
      _
    %2130 = vsyncpa [#allocation3], 1
    %s2131 = scalar_lea.sflag [#allocation3], 1
    %2132 = vsyncpa %s2131, 1

</llo_original>
